<compile_context>
chip_gen: v6e
topology: v6e:2x2x1
jax: 0.10.0
libtpu: 0.0.40
codegen_flags: <defaults>
</compile_context>

<pallas_src>
import functools

import jax
import jax.numpy as jnp
from jax import lax
from jax.experimental import pallas as pl
from jax.experimental.pallas import tpu as pltpu

_LANE = 128
_SUBLANE = 8


def _round_up(x, m):
    return ((x + m - 1) // m) * m


def cnc_kernel(x_ref, wx_ref, wh_ref, b_ref, w1_ref, b1_ref, w2_ref, b2_ref,
               out_ref, h_ref, c_ref, zx_ref,
               *, h_dim, tc, t_total, n_chunks, rev_roll):
    """One grid step = one chunk of `tc` timesteps of the LSTM recurrence.

    x_ref : (Tc*Bp, Dp)  streamed per-chunk input rows (time-major, batch-minor)
    wx_ref: (Dp, Gp)     input->gates weights, gates packed tight along lanes
    wh_ref: (Hp, Gp)     hidden->gates weights (rows [H:] exactly zero)
    b_ref : (1, Gp)      b_ih + b_hh, packed like the gates
    w1_ref: (Hp, Hp), b1_ref: (1, Hp)   fc1 (rows/cols [H:] zero)
    w2_ref: (Hp, Op), b2_ref: (1, Op)   fc2
    out_ref: (Bp, Op)    lane-dense output slab (written on the last chunk)
    h_ref, c_ref: (Bp, Hp) f32 VMEM scratch, persistent across grid steps
    zx_ref: (Tc*Bp, Gp)  f32 VMEM scratch holding the hoisted input projection
    """
    bp, hp = h_ref.shape
    gp = zx_ref.shape[1]
    mdt = wh_ref.dtype                      # MXU operand dtype (f32 or bf16)

    chunk = pl.program_id(0)
    last = n_chunks - 1
    t_tail = t_total - last * tc            # static, 1 <= t_tail <= tc

    @pl.when(chunk == 0)
    def _init():
        h_ref[...] = jnp.zeros_like(h_ref)
        c_ref[...] = jnp.zeros_like(c_ref)

    # ---- Hoisted input projection: ONE chunk-level MXU push + bias add, off
    #      the serial recurrence (overlaps the next chunk's x DMA).
    zx_ref[...] = (
        jnp.dot(x_ref[...].astype(mdt), wx_ref[...],
                preferred_element_type=jnp.float32)
        + b_ref[...])

    wh = wh_ref[...]                        # resident across grid steps

    # Lane mask selecting the tanh ('g') gate inside the packed gate tile.
    lane = lax.broadcasted_iota(jnp.int32, (bp, gp), 1)
    g_sel = (lane >= 2 * h_dim) & (lane < 3 * h_dim)

    # Shifts aligning the f/g/o gate blocks onto the h/c lanes [0:H).
    sgn = 1 if rev_roll else -1
    sh_f, sh_g, sh_o = ((sgn * k * h_dim) % gp for k in (1, 2, 3))

    def _align(v, shift):
        v = pltpu.roll(v, shift=shift, axis=1)     # XLU lane rotation
        return v if gp == hp else v[:, :hp]

    def step(j, carry):
        h, c = carry
        row = pl.multiple_of(j * bp, bp)
        # Serial critical path: one K=Hp MXU push + 3 EUP passes + VPU combine.
        z = zx_ref[pl.ds(row, bp), :] + jnp.dot(
            h.astype(mdt), wh, preferred_element_type=jnp.float32)
        sig = jax.nn.sigmoid(z)               # one EUP pass over packed gates
        tnh = jnp.tanh(z)                     # one EUP pass
        act = jnp.where(g_sel, tnh, sig)      # lanes: [ i | f | g(tanh) | o ]
        i_g = act if gp == hp else act[:, :hp]
        f_g = _align(act, sh_f)
        g_g = _align(act, sh_g)
        o_g = _align(act, sh_o)
        c_new = f_g * c + i_g * g_g
        h_new = o_g * jnp.tanh(c_new)
        # Lanes >= h_dim of h/c carry bounded junk; the exactly-zero rows [H:]
        # of wh / w1 keep it out of every downstream matmul.
        return h_new, c_new

    def run_steps(n_steps):
        h, c = lax.fori_loop(0, n_steps, step, (h_ref[...], c_ref[...]),
                             unroll=min(8, n_steps))
        h_ref[...] = h
        c_ref[...] = c
        return h

    if n_chunks > 1:          # static: only emitted when full chunks exist
        @pl.when(chunk != last)
        def _full_chunk():
            run_steps(tc)

    @pl.when(chunk == last)
    def _last_chunk():
        h = run_steps(t_tail)                 # static shorter loop, no masking
        # fc1 -> ReLU -> fc2 tail, once, on the final hidden state.
        y1 = jnp.maximum(
            jnp.dot(h.astype(mdt), w1_ref[...],
                    preferred_element_type=jnp.float32) + b1_ref[...], 0.0)
        out = (jnp.dot(y1.astype(mdt), w2_ref[...],
                       preferred_element_type=jnp.float32) + b2_ref[...])
        out_ref[...] = out.astype(out_ref.dtype)


def init_params(key, input_size, hidden_size, output_size):
    """Deterministic parameter init mimicking PyTorch's default uniform init."""
    ks = jax.random.split(key, 8)
    k_lstm = 1.0 / jnp.sqrt(hidden_size)

    def u(k, shape, bound):
        return jax.random.uniform(k, shape, jnp.float32, -bound, bound)

    w_ih = u(ks[0], (4 * hidden_size, input_size), k_lstm)   # PyTorch layout
    w_hh = u(ks[1], (4 * hidden_size, hidden_size), k_lstm)
    b_ih = u(ks[2], (4 * hidden_size,), k_lstm)
    b_hh = u(ks[3], (4 * hidden_size,), k_lstm)

    k_fc = 1.0 / jnp.sqrt(hidden_size)
    w1 = u(ks[4], (hidden_size, hidden_size), k_fc)
    b1 = u(ks[5], (hidden_size,), k_fc)
    w2 = u(ks[6], (output_size, hidden_size), k_fc)
    b2 = u(ks[7], (output_size,), k_fc)

    return dict(w_ih=w_ih, w_hh=w_hh, b_ih=b_ih, b_hh=b_hh,
                w1=w1, b1=b1, w2=w2, b2=b2)


def cnc_forward(x, params, hidden_size, *, time_chunk=32,
                mxu_dtype=jnp.bfloat16, reverse_gate_roll=False):
    # Mirror the PyTorch dim fixups (glue, outside the kernel).
    if x.ndim == 2:
        x = x[:, None, :]
    elif x.ndim == 1:
        x = x[None, None, :]
    B, T, D = x.shape
    H = hidden_size
    O = params["w2"].shape[0]

    Bp = _round_up(B, _SUBLANE)          # sublane-aligned batch
    Hp = _round_up(H, _LANE)             # lane width of the h/c state
    Gp = _round_up(4 * H, _LANE)         # tightly packed gate lanes [i|f|g|o]
    Dp = _round_up(D, _LANE)
    Op = _round_up(O, _LANE)             # lane-dense output slab

    Tc = max(1, min(T, time_chunk))      # timesteps per grid step
    n_chunks = -(-T // Tc)
    Tp = n_chunks * Tc

    f32 = jnp.float32

    # ---- input: time-major, padded, flattened to (Tp*Bp, Dp) so the chunk
    #      level x-projection is a single 2-D matmul (no in-kernel reshape).
    x_tm = jnp.transpose(x.astype(f32), (1, 0, 2))
    x_tm = jnp.pad(x_tm, ((0, Tp - T), (0, Bp - B), (0, Dp - D)))
    x_flat = x_tm.reshape(Tp * Bp, Dp)

    # ---- LSTM weights: split input/recurrent, gates packed tight along lanes.
    #      All padding is exactly zero so padded lanes/rows never leak into the
    #      live [0:H) state (bf16 casts preserve exact zeros).
    w_ih = params["w_ih"].astype(f32)            # (4H, D)  torch layout
    w_hh = params["w_hh"].astype(f32)            # (4H, H)
    b_g = (params["b_ih"] + params["b_hh"]).astype(f32)

    w_x = jnp.zeros((Dp, Gp), f32)
    w_h = jnp.zeros((Hp, Gp), f32)
    b = jnp.zeros((1, Gp), f32)
    for g in range(4):                           # gate order i, f, g, o
        w_x = w_x.at[:D, g * H:(g + 1) * H].set(w_ih[g * H:(g + 1) * H, :].T)
        w_h = w_h.at[:H, g * H:(g + 1) * H].set(w_hh[g * H:(g + 1) * H, :].T)
        b = b.at[0, g * H:(g + 1) * H].set(b_g[g * H:(g + 1) * H])

    w1 = jnp.zeros((Hp, Hp), f32).at[:H, :H].set(params["w1"].astype(f32).T)
    b1 = jnp.zeros((1, Hp), f32).at[0, :H].set(params["b1"].astype(f32))
    w2 = jnp.zeros((Hp, Op), f32).at[:H, :O].set(params["w2"].astype(f32).T)
    b2 = jnp.zeros((1, Op), f32).at[0, :O].set(params["b2"].astype(f32))

    # bf16 MXU operands on v6e/v7x (biases + gate math stay f32; on v5e the
    # bf16 values only ever feed the MXU, which supports them natively).
    w_x = w_x.astype(mxu_dtype)
    w_h = w_h.astype(mxu_dtype)
    w1 = w1.astype(mxu_dtype)
    w2 = w2.astype(mxu_dtype)

    grid_spec = pltpu.PrefetchScalarGridSpec(
        num_scalar_prefetch=0,
        grid=(n_chunks,),
        in_specs=[
            pl.BlockSpec((Tc * Bp, Dp), lambda t: (t, 0)),    # streamed x
            # Resident parameters (constant index maps).  At large H consider
            # pipeline_mode=pl.Buffered(1) to drop their second VMEM buffer
            # (matters for v7x's 64 MiB VMEM); negligible at these sizes.
            pl.BlockSpec((Dp, Gp), lambda t: (0, 0)),
            pl.BlockSpec((Hp, Gp), lambda t: (0, 0)),
            pl.BlockSpec((1, Gp), lambda t: (0, 0)),
            pl.BlockSpec((Hp, Hp), lambda t: (0, 0)),
            pl.BlockSpec((1, Hp), lambda t: (0, 0)),
            pl.BlockSpec((Hp, Op), lambda t: (0, 0)),
            pl.BlockSpec((1, Op), lambda t: (0, 0)),
        ],
        out_specs=pl.BlockSpec((Bp, Op), lambda t: (0, 0)),
        scratch_shapes=[
            pltpu.VMEM((Bp, Hp), jnp.float32),          # h  (persists)
            pltpu.VMEM((Bp, Hp), jnp.float32),          # c  (persists)
            pltpu.VMEM((Tc * Bp, Gp), jnp.float32),     # hoisted x-projection
        ],
    )

    out = pl.pallas_call(
        functools.partial(cnc_kernel, h_dim=H, tc=Tc, t_total=T,
                          n_chunks=n_chunks, rev_roll=reverse_gate_roll),
        out_shape=jax.ShapeDtypeStruct((Bp, Op), jnp.float32),
        grid_spec=grid_spec,
        # The time axis is a serial recurrence -> "arbitrary".  If batch ever
        # spans multiple sublane tiles (B >= 16), add a leading batch-tile grid
        # axis marked "parallel" so v7x's second TensorCore gets a shard.
        compiler_params=pltpu.CompilerParams(
            dimension_semantics=("arbitrary",)),
    )(x_flat, w_x, w_h, b, w1, b1, w2, b2)

    return out[:B, :O]


def cnc_forward_ref(x, params):
    """Pure-JAX reference of the PyTorch forward, for validation."""
    if x.ndim == 2:
        x = x[:, None, :]
    elif x.ndim == 1:
        x = x[None, None, :]
    B, T, _ = x.shape
    H = params["w1"].shape[0]
    h = jnp.zeros((B, H), jnp.float32)
    c = jnp.zeros((B, H), jnp.float32)
    for t in range(T):
        z = (x[:, t, :] @ params["w_ih"].T + params["b_ih"]
             + h @ params["w_hh"].T + params["b_hh"])
        i = jax.nn.sigmoid(z[:, 0 * H:1 * H])
        f = jax.nn.sigmoid(z[:, 1 * H:2 * H])
        g = jnp.tanh(z[:, 2 * H:3 * H])
        o = jax.nn.sigmoid(z[:, 3 * H:4 * H])
        c = f * c + i * g
        h = o * jnp.tanh(c)
    y1 = jax.nn.relu(h @ params["w1"].T + params["b1"])
    return y1 @ params["w2"].T + params["b2"]


if __name__ == "__main__":
    input_size, hidden_size, output_size = 16, 32, 8
    batch, seq = 2, 8

    key = jax.random.PRNGKey(0)
    k_x, k_p = jax.random.split(key)
    x = jax.random.normal(k_x, (batch, seq, input_size), jnp.float32)
    params = init_params(k_p, input_size, hidden_size, output_size)

    ref = cnc_forward_ref(x, params)

    def run(mdt, rev):
        return jax.block_until_ready(
            cnc_forward(x, params, hidden_size, mxu_dtype=mdt,
                        reverse_gate_roll=rev))

    # Exact path (f32 MXU operands): must match the reference to 1e-4.
    rev = False
    out_f32 = run(jnp.float32, rev)
    if not bool(jnp.allclose(out_f32, ref, atol=1e-4, rtol=1e-4)):
        # Defensive: pin the pltpu.roll lane-rotation convention against the
        # pure-JAX reference once (guards against convention drift across
        # jax/Mosaic versions); the packed-gate layout itself is unchanged.
        rev = True
        out_f32 = run(jnp.float32, rev)
    assert out_f32.shape == (batch, output_size)
    assert jnp.allclose(out_f32, ref, atol=1e-4, rtol=1e-4), "f32 kernel mismatch"

    # Fast path (bf16 MXU operands, f32 gate math / accumulation) for v6e/v7x.
    out_bf16 = run(jnp.bfloat16, rev)
    assert out_bf16.shape == (batch, output_size)
    assert jnp.allclose(out_bf16, ref, atol=2e-2, rtol=2e-2), "bf16 kernel mismatch"

    print("KERNEL_OK")
</pallas_src>

<mosaic_0001>
module attributes {stable_mosaic.version = 11 : i64} {
  func.func @cnc_kernel(%arg0: i32, %arg1: memref<64x128xf32, #tpu.memory_space<vmem>>, %arg2: memref<128x128xf32, #tpu.memory_space<vmem>>, %arg3: memref<128x128xf32, #tpu.memory_space<vmem>>, %arg4: memref<1x128xf32, #tpu.memory_space<vmem>>, %arg5: memref<128x128xf32, #tpu.memory_space<vmem>>, %arg6: memref<1x128xf32, #tpu.memory_space<vmem>>, %arg7: memref<128x128xf32, #tpu.memory_space<vmem>>, %arg8: memref<1x128xf32, #tpu.memory_space<vmem>>, %arg9: memref<8x128xf32, #tpu.memory_space<vmem>>, %arg10: memref<8x128xf32, #tpu.memory_space<vmem>>, %arg11: memref<8x128xf32, #tpu.memory_space<vmem>>, %arg12: memref<64x128xf32, #tpu.memory_space<vmem>>) attributes {dimension_semantics = [#tpu.dimension_semantics<arbitrary>], iteration_bounds = array<i64: 1>, scalar_prefetch = 0 : i64, scratch_operands = 3 : i64, tpu.core_type = #tpu.core_type<tc>, window_params = [{transform_indices = @transform_0, window_bounds = array<i64: 64, 128>}, {pipeline_mode = #tpu.pipeline_mode<synchronous>, transform_indices = @transform_1, window_bounds = array<i64: 128, 128>}, {pipeline_mode = #tpu.pipeline_mode<synchronous>, transform_indices = @transform_2, window_bounds = array<i64: 128, 128>}, {pipeline_mode = #tpu.pipeline_mode<synchronous>, transform_indices = @transform_3, window_bounds = array<i64: 1, 128>}, {pipeline_mode = #tpu.pipeline_mode<synchronous>, transform_indices = @transform_4, window_bounds = array<i64: 128, 128>}, {pipeline_mode = #tpu.pipeline_mode<synchronous>, transform_indices = @transform_5, window_bounds = array<i64: 1, 128>}, {pipeline_mode = #tpu.pipeline_mode<synchronous>, transform_indices = @transform_6, window_bounds = array<i64: 128, 128>}, {pipeline_mode = #tpu.pipeline_mode<synchronous>, transform_indices = @transform_7, window_bounds = array<i64: 1, 128>}, {pipeline_mode = #tpu.pipeline_mode<synchronous>, transform_indices = @transform_8, window_bounds = array<i64: 8, 128>}]} {
    %c0_i32 = arith.constant 0 : i32
    %0 = arith.cmpi eq, %arg0, %c0_i32 : i32
    %1 = arith.extui %0 : i1 to i32
    %c0_i32_0 = arith.constant 0 : i32
    %2 = arith.cmpi ne, %1, %c0_i32_0 : i32
    scf.if %2 {
      %cst_12 = arith.constant 0.000000e+00 : f32
      %20 = vector.broadcast %cst_12 : f32 to vector<8x128xf32>
      %c0_13 = arith.constant 0 : index
      %c0_14 = arith.constant 0 : index
      %21 = vector.load %arg10[%c0_13, %c0_14] : memref<8x128xf32, #tpu.memory_space<vmem>>, vector<8x128xf32>
      tpu.vector_store %arg10[%c0_13, %c0_14], %20 {strides = array<i32>} : memref<8x128xf32, #tpu.memory_space<vmem>>, vector<8x128xf32>,
      %cst_15 = arith.constant 0.000000e+00 : f32
      %22 = vector.broadcast %cst_15 : f32 to vector<8x128xf32>
      %c0_16 = arith.constant 0 : index
      %c0_17 = arith.constant 0 : index
      %23 = vector.load %arg11[%c0_16, %c0_17] : memref<8x128xf32, #tpu.memory_space<vmem>>, vector<8x128xf32>
      tpu.vector_store %arg11[%c0_16, %c0_17], %22 {strides = array<i32>} : memref<8x128xf32, #tpu.memory_space<vmem>>, vector<8x128xf32>,
    } else {
    }
    %c0 = arith.constant 0 : index
    %c0_1 = arith.constant 0 : index
    %3 = vector.load %arg1[%c0, %c0_1] : memref<64x128xf32, #tpu.memory_space<vmem>>, vector<64x128xf32>
    %c0_2 = arith.constant 0 : index
    %c0_3 = arith.constant 0 : index
    %4 = vector.load %arg2[%c0_2, %c0_3] : memref<128x128xf32, #tpu.memory_space<vmem>>, vector<128x128xf32>
    %cst = arith.constant dense<0.000000e+00> : vector<64x128xf32>
    %5 = tpu.matmul %3, %4, %cst {dimension_numbers = #tpu.dot_dimension_numbers<[1], [0], [0], [1], [0, 0, 1, 1], [], []>} : vector<64x128xf32>, vector<128x128xf32>, vector<64x128xf32> -> vector<64x128xf32>
    %c0_4 = arith.constant 0 : index
    %c0_5 = arith.constant 0 : index
    %6 = vector.load %arg4[%c0_4, %c0_5] : memref<1x128xf32, #tpu.memory_space<vmem>>, vector<1x128xf32>
    %7 = vector.broadcast %6 : vector<1x128xf32> to vector<64x128xf32>
    %8 = arith.addf %5, %7 : vector<64x128xf32>
    %c0_6 = arith.constant 0 : index
    %c0_7 = arith.constant 0 : index
    %9 = vector.load %arg12[%c0_6, %c0_7] : memref<64x128xf32, #tpu.memory_space<vmem>>, vector<64x128xf32>
    tpu.vector_store %arg12[%c0_6, %c0_7], %8 {strides = array<i32>} : memref<64x128xf32, #tpu.memory_space<vmem>>, vector<64x128xf32>,
    %c0_8 = arith.constant 0 : index
    %c0_9 = arith.constant 0 : index
    %10 = vector.load %arg3[%c0_8, %c0_9] : memref<128x128xf32, #tpu.memory_space<vmem>>, vector<128x128xf32>
    %11 = tpu.iota {dimensions = array<i32: 1>} : vector<8x128xi32>
    %c64_i32 = arith.constant 64 : i32
    %12 = vector.broadcast %c64_i32 : i32 to vector<8x128xi32>
    %13 = arith.cmpi sge, %11, %12 : vector<8x128xi32>
    %c96_i32 = arith.constant 96 : i32
    %14 = vector.broadcast %c96_i32 : i32 to vector<8x128xi32>
    %15 = arith.cmpi slt, %11, %14 : vector<8x128xi32>
    %16 = arith.andi %13, %15 : vector<8x128xi1>
    %c0_i32_10 = arith.constant 0 : i32
    %17 = arith.cmpi eq, %arg0, %c0_i32_10 : i32
    %18 = arith.extui %17 : i1 to i32
    %c0_i32_11 = arith.constant 0 : i32
    %19 = arith.cmpi ne, %18, %c0_i32_11 : i32
    scf.if %19 {
      %c0_12 = arith.constant 0 : index
      %c0_13 = arith.constant 0 : index
      %20 = vector.load %arg10[%c0_12, %c0_13] : memref<8x128xf32, #tpu.memory_space<vmem>>, vector<8x128xf32>
      %c0_14 = arith.constant 0 : index
      %c0_15 = arith.constant 0 : index
      %21 = vector.load %arg11[%c0_14, %c0_15] : memref<8x128xf32, #tpu.memory_space<vmem>>, vector<8x128xf32>
      %c0_i32_16 = arith.constant 0 : i32
      %c8_i32 = arith.constant 8 : i32
      %22 = arith.muli %c0_i32_16, %c8_i32 : i32
      %23 = tpu.assume_multiple %22, 8 : i32
      %24 = arith.index_cast %23 : i32 to index
      %c0_17 = arith.constant 0 : index
      %25 = vector.load %arg12[%24, %c0_17] : memref<64x128xf32, #tpu.memory_space<vmem>>, vector<8x128xf32>
      %cst_18 = arith.constant dense<0.000000e+00> : vector<8x128xf32>
      %26 = tpu.matmul %20, %10, %cst_18 {dimension_numbers = #tpu.dot_dimension_numbers<[1], [0], [0], [1], [0, 0, 1, 1], [], []>} : vector<8x128xf32>, vector<128x128xf32>, vector<8x128xf32> -> vector<8x128xf32>
      %27 = arith.addf %25, %26 : vector<8x128xf32>
      %28 = arith.negf %27 : vector<8x128xf32>
      %29 = math.exp %28 : vector<8x128xf32>
      %cst_19 = arith.constant 1.000000e+00 : f32
      %30 = vector.broadcast %cst_19 : f32 to vector<8x128xf32>
      %31 = arith.addf %30, %29 : vector<8x128xf32>
      %32 = arith.divf %30, %31 : vector<8x128xf32>
      %33 = math.tanh %27 : vector<8x128xf32>
      %34 = arith.select %16, %33, %32 : vector<8x128xi1>, vector<8x128xf32>
      %c96_i32_20 = arith.constant 96 : i32
      %35 = tpu.dynamic_rotate %34 by %c96_i32_20 dim 1 : vector<8x128xf32>, i32 -> vector<8x128xf32>
      %c64_i32_21 = arith.constant 64 : i32
      %36 = tpu.dynamic_rotate %34 by %c64_i32_21 dim 1 : vector<8x128xf32>, i32 -> vector<8x128xf32>
      %c32_i32 = arith.constant 32 : i32
      %37 = tpu.dynamic_rotate %34 by %c32_i32 dim 1 : vector<8x128xf32>, i32 -> vector<8x128xf32>
      %38 = arith.mulf %35, %21 : vector<8x128xf32>
      %39 = arith.mulf %34, %36 : vector<8x128xf32>
      %40 = arith.addf %38, %39 : vector<8x128xf32>
      %41 = math.tanh %40 : vector<8x128xf32>
      %42 = arith.mulf %37, %41 : vector<8x128xf32>
      %c1_i32 = arith.constant 1 : i32
      %c8_i32_22 = arith.constant 8 : i32
      %43 = arith.muli %c1_i32, %c8_i32_22 : i32
      %44 = tpu.assume_multiple %43, 8 : i32
      %45 = arith.index_cast %44 : i32 to index
      %c0_23 = arith.constant 0 : index
      %46 = vector.load %arg12[%45, %c0_23] : memref<64x128xf32, #tpu.memory_space<vmem>>, vector<8x128xf32>
      %cst_24 = arith.constant dense<0.000000e+00> : vector<8x128xf32>
      %47 = tpu.matmul %42, %10, %cst_24 {dimension_numbers = #tpu.dot_dimension_numbers<[1], [0], [0], [1], [0, 0, 1, 1], [], []>} : vector<8x128xf32>, vector<128x128xf32>, vector<8x128xf32> -> vector<8x128xf32>
      %48 = arith.addf %46, %47 : vector<8x128xf32>
      %49 = arith.negf %48 : vector<8x128xf32>
      %50 = math.exp %49 : vector<8x128xf32>
      %cst_25 = arith.constant 1.000000e+00 : f32
      %51 = vector.broadcast %cst_25 : f32 to vector<8x128xf32>
      %52 = arith.addf %51, %50 : vector<8x128xf32>
      %53 = arith.divf %51, %52 : vector<8x128xf32>
      %54 = math.tanh %48 : vector<8x128xf32>
      %55 = arith.select %16, %54, %53 : vector<8x128xi1>, vector<8x128xf32>
      %c96_i32_26 = arith.constant 96 : i32
      %56 = tpu.dynamic_rotate %55 by %c96_i32_26 dim 1 : vector<8x128xf32>, i32 -> vector<8x128xf32>
      %c64_i32_27 = arith.constant 64 : i32
      %57 = tpu.dynamic_rotate %55 by %c64_i32_27 dim 1 : vector<8x128xf32>, i32 -> vector<8x128xf32>
      %c32_i32_28 = arith.constant 32 : i32
      %58 = tpu.dynamic_rotate %55 by %c32_i32_28 dim 1 : vector<8x128xf32>, i32 -> vector<8x128xf32>
      %59 = arith.mulf %56, %40 : vector<8x128xf32>
      %60 = arith.mulf %55, %57 : vector<8x128xf32>
      %61 = arith.addf %59, %60 : vector<8x128xf32>
      %62 = math.tanh %61 : vector<8x128xf32>
      %63 = arith.mulf %58, %62 : vector<8x128xf32>
      %c2_i32 = arith.constant 2 : i32
      %c8_i32_29 = arith.constant 8 : i32
      %64 = arith.muli %c2_i32, %c8_i32_29 : i32
      %65 = tpu.assume_multiple %64, 8 : i32
      %66 = arith.index_cast %65 : i32 to index
      %c0_30 = arith.constant 0 : index
      %67 = vector.load %arg12[%66, %c0_30] : memref<64x128xf32, #tpu.memory_space<vmem>>, vector<8x128xf32>
      %cst_31 = arith.constant dense<0.000000e+00> : vector<8x128xf32>
      %68 = tpu.matmul %63, %10, %cst_31 {dimension_numbers = #tpu.dot_dimension_numbers<[1], [0], [0], [1], [0, 0, 1, 1], [], []>} : vector<8x128xf32>, vector<128x128xf32>, vector<8x128xf32> -> vector<8x128xf32>
      %69 = arith.addf %67, %68 : vector<8x128xf32>
      %70 = arith.negf %69 : vector<8x128xf32>
      %71 = math.exp %70 : vector<8x128xf32>
      %cst_32 = arith.constant 1.000000e+00 : f32
      %72 = vector.broadcast %cst_32 : f32 to vector<8x128xf32>
      %73 = arith.addf %72, %71 : vector<8x128xf32>
      %74 = arith.divf %72, %73 : vector<8x128xf32>
      %75 = math.tanh %69 : vector<8x128xf32>
      %76 = arith.select %16, %75, %74 : vector<8x128xi1>, vector<8x128xf32>
      %c96_i32_33 = arith.constant 96 : i32
      %77 = tpu.dynamic_rotate %76 by %c96_i32_33 dim 1 : vector<8x128xf32>, i32 -> vector<8x128xf32>
      %c64_i32_34 = arith.constant 64 : i32
      %78 = tpu.dynamic_rotate %76 by %c64_i32_34 dim 1 : vector<8x128xf32>, i32 -> vector<8x128xf32>
      %c32_i32_35 = arith.constant 32 : i32
      %79 = tpu.dynamic_rotate %76 by %c32_i32_35 dim 1 : vector<8x128xf32>, i32 -> vector<8x128xf32>
      %80 = arith.mulf %77, %61 : vector<8x128xf32>
      %81 = arith.mulf %76, %78 : vector<8x128xf32>
      %82 = arith.addf %80, %81 : vector<8x128xf32>
      %83 = math.tanh %82 : vector<8x128xf32>
      %84 = arith.mulf %79, %83 : vector<8x128xf32>
      %c3_i32 = arith.constant 3 : i32
      %c8_i32_36 = arith.constant 8 : i32
      %85 = arith.muli %c3_i32, %c8_i32_36 : i32
      %86 = tpu.assume_multiple %85, 8 : i32
      %87 = arith.index_cast %86 : i32 to index
      %c0_37 = arith.constant 0 : index
      %88 = vector.load %arg12[%87, %c0_37] : memref<64x128xf32, #tpu.memory_space<vmem>>, vector<8x128xf32>
      %cst_38 = arith.constant dense<0.000000e+00> : vector<8x128xf32>
      %89 = tpu.matmul %84, %10, %cst_38 {dimension_numbers = #tpu.dot_dimension_numbers<[1], [0], [0], [1], [0, 0, 1, 1], [], []>} : vector<8x128xf32>, vector<128x128xf32>, vector<8x128xf32> -> vector<8x128xf32>
      %90 = arith.addf %88, %89 : vector<8x128xf32>
      %91 = arith.negf %90 : vector<8x128xf32>
      %92 = math.exp %91 : vector<8x128xf32>
      %cst_39 = arith.constant 1.000000e+00 : f32
      %93 = vector.broadcast %cst_39 : f32 to vector<8x128xf32>
      %94 = arith.addf %93, %92 : vector<8x128xf32>
      %95 = arith.divf %93, %94 : vector<8x128xf32>
      %96 = math.tanh %90 : vector<8x128xf32>
      %97 = arith.select %16, %96, %95 : vector<8x128xi1>, vector<8x128xf32>
      %c96_i32_40 = arith.constant 96 : i32
      %98 = tpu.dynamic_rotate %97 by %c96_i32_40 dim 1 : vector<8x128xf32>, i32 -> vector<8x128xf32>
      %c64_i32_41 = arith.constant 64 : i32
      %99 = tpu.dynamic_rotate %97 by %c64_i32_41 dim 1 : vector<8x128xf32>, i32 -> vector<8x128xf32>
      %c32_i32_42 = arith.constant 32 : i32
      %100 = tpu.dynamic_rotate %97 by %c32_i32_42 dim 1 : vector<8x128xf32>, i32 -> vector<8x128xf32>
      %101 = arith.mulf %98, %82 : vector<8x128xf32>
      %102 = arith.mulf %97, %99 : vector<8x128xf32>
      %103 = arith.addf %101, %102 : vector<8x128xf32>
      %104 = math.tanh %103 : vector<8x128xf32>
      %105 = arith.mulf %100, %104 : vector<8x128xf32>
      %c4_i32 = arith.constant 4 : i32
      %c8_i32_43 = arith.constant 8 : i32
      %106 = arith.muli %c4_i32, %c8_i32_43 : i32
      %107 = tpu.assume_multiple %106, 8 : i32
      %108 = arith.index_cast %107 : i32 to index
      %c0_44 = arith.constant 0 : index
      %109 = vector.load %arg12[%108, %c0_44] : memref<64x128xf32, #tpu.memory_space<vmem>>, vector<8x128xf32>
      %cst_45 = arith.constant dense<0.000000e+00> : vector<8x128xf32>
      %110 = tpu.matmul %105, %10, %cst_45 {dimension_numbers = #tpu.dot_dimension_numbers<[1], [0], [0], [1], [0, 0, 1, 1], [], []>} : vector<8x128xf32>, vector<128x128xf32>, vector<8x128xf32> -> vector<8x128xf32>
      %111 = arith.addf %109, %110 : vector<8x128xf32>
      %112 = arith.negf %111 : vector<8x128xf32>
      %113 = math.exp %112 : vector<8x128xf32>
      %cst_46 = arith.constant 1.000000e+00 : f32
      %114 = vector.broadcast %cst_46 : f32 to vector<8x128xf32>
      %115 = arith.addf %114, %113 : vector<8x128xf32>
      %116 = arith.divf %114, %115 : vector<8x128xf32>
      %117 = math.tanh %111 : vector<8x128xf32>
      %118 = arith.select %16, %117, %116 : vector<8x128xi1>, vector<8x128xf32>
      %c96_i32_47 = arith.constant 96 : i32
      %119 = tpu.dynamic_rotate %118 by %c96_i32_47 dim 1 : vector<8x128xf32>, i32 -> vector<8x128xf32>
      %c64_i32_48 = arith.constant 64 : i32
      %120 = tpu.dynamic_rotate %118 by %c64_i32_48 dim 1 : vector<8x128xf32>, i32 -> vector<8x128xf32>
      %c32_i32_49 = arith.constant 32 : i32
      %121 = tpu.dynamic_rotate %118 by %c32_i32_49 dim 1 : vector<8x128xf32>, i32 -> vector<8x128xf32>
      %122 = arith.mulf %119, %103 : vector<8x128xf32>
      %123 = arith.mulf %118, %120 : vector<8x128xf32>
      %124 = arith.addf %122, %123 : vector<8x128xf32>
      %125 = math.tanh %124 : vector<8x128xf32>
      %126 = arith.mulf %121, %125 : vector<8x128xf32>
      %c5_i32 = arith.constant 5 : i32
      %c8_i32_50 = arith.constant 8 : i32
      %127 = arith.muli %c5_i32, %c8_i32_50 : i32
      %128 = tpu.assume_multiple %127, 8 : i32
      %129 = arith.index_cast %128 : i32 to index
      %c0_51 = arith.constant 0 : index
      %130 = vector.load %arg12[%129, %c0_51] : memref<64x128xf32, #tpu.memory_space<vmem>>, vector<8x128xf32>
      %cst_52 = arith.constant dense<0.000000e+00> : vector<8x128xf32>
      %131 = tpu.matmul %126, %10, %cst_52 {dimension_numbers = #tpu.dot_dimension_numbers<[1], [0], [0], [1], [0, 0, 1, 1], [], []>} : vector<8x128xf32>, vector<128x128xf32>, vector<8x128xf32> -> vector<8x128xf32>
      %132 = arith.addf %130, %131 : vector<8x128xf32>
      %133 = arith.negf %132 : vector<8x128xf32>
      %134 = math.exp %133 : vector<8x128xf32>
      %cst_53 = arith.constant 1.000000e+00 : f32
      %135 = vector.broadcast %cst_53 : f32 to vector<8x128xf32>
      %136 = arith.addf %135, %134 : vector<8x128xf32>
      %137 = arith.divf %135, %136 : vector<8x128xf32>
      %138 = math.tanh %132 : vector<8x128xf32>
      %139 = arith.select %16, %138, %137 : vector<8x128xi1>, vector<8x128xf32>
      %c96_i32_54 = arith.constant 96 : i32
      %140 = tpu.dynamic_rotate %139 by %c96_i32_54 dim 1 : vector<8x128xf32>, i32 -> vector<8x128xf32>
      %c64_i32_55 = arith.constant 64 : i32
      %141 = tpu.dynamic_rotate %139 by %c64_i32_55 dim 1 : vector<8x128xf32>, i32 -> vector<8x128xf32>
      %c32_i32_56 = arith.constant 32 : i32
      %142 = tpu.dynamic_rotate %139 by %c32_i32_56 dim 1 : vector<8x128xf32>, i32 -> vector<8x128xf32>
      %143 = arith.mulf %140, %124 : vector<8x128xf32>
      %144 = arith.mulf %139, %141 : vector<8x128xf32>
      %145 = arith.addf %143, %144 : vector<8x128xf32>
      %146 = math.tanh %145 : vector<8x128xf32>
      %147 = arith.mulf %142, %146 : vector<8x128xf32>
      %c6_i32 = arith.constant 6 : i32
      %c8_i32_57 = arith.constant 8 : i32
      %148 = arith.muli %c6_i32, %c8_i32_57 : i32
      %149 = tpu.assume_multiple %148, 8 : i32
      %150 = arith.index_cast %149 : i32 to index
      %c0_58 = arith.constant 0 : index
      %151 = vector.load %arg12[%150, %c0_58] : memref<64x128xf32, #tpu.memory_space<vmem>>, vector<8x128xf32>
      %cst_59 = arith.constant dense<0.000000e+00> : vector<8x128xf32>
      %152 = tpu.matmul %147, %10, %cst_59 {dimension_numbers = #tpu.dot_dimension_numbers<[1], [0], [0], [1], [0, 0, 1, 1], [], []>} : vector<8x128xf32>, vector<128x128xf32>, vector<8x128xf32> -> vector<8x128xf32>
      %153 = arith.addf %151, %152 : vector<8x128xf32>
      %154 = arith.negf %153 : vector<8x128xf32>
      %155 = math.exp %154 : vector<8x128xf32>
      %cst_60 = arith.constant 1.000000e+00 : f32
      %156 = vector.broadcast %cst_60 : f32 to vector<8x128xf32>
      %157 = arith.addf %156, %155 : vector<8x128xf32>
      %158 = arith.divf %156, %157 : vector<8x128xf32>
      %159 = math.tanh %153 : vector<8x128xf32>
      %160 = arith.select %16, %159, %158 : vector<8x128xi1>, vector<8x128xf32>
      %c96_i32_61 = arith.constant 96 : i32
      %161 = tpu.dynamic_rotate %160 by %c96_i32_61 dim 1 : vector<8x128xf32>, i32 -> vector<8x128xf32>
      %c64_i32_62 = arith.constant 64 : i32
      %162 = tpu.dynamic_rotate %160 by %c64_i32_62 dim 1 : vector<8x128xf32>, i32 -> vector<8x128xf32>
      %c32_i32_63 = arith.constant 32 : i32
      %163 = tpu.dynamic_rotate %160 by %c32_i32_63 dim 1 : vector<8x128xf32>, i32 -> vector<8x128xf32>
      %164 = arith.mulf %161, %145 : vector<8x128xf32>
      %165 = arith.mulf %160, %162 : vector<8x128xf32>
      %166 = arith.addf %164, %165 : vector<8x128xf32>
      %167 = math.tanh %166 : vector<8x128xf32>
      %168 = arith.mulf %163, %167 : vector<8x128xf32>
      %c7_i32 = arith.constant 7 : i32
      %c8_i32_64 = arith.constant 8 : i32
      %169 = arith.muli %c7_i32, %c8_i32_64 : i32
      %170 = tpu.assume_multiple %169, 8 : i32
      %171 = arith.index_cast %170 : i32 to index
      %c0_65 = arith.constant 0 : index
      %172 = vector.load %arg12[%171, %c0_65] : memref<64x128xf32, #tpu.memory_space<vmem>>, vector<8x128xf32>
      %cst_66 = arith.constant dense<0.000000e+00> : vector<8x128xf32>
      %173 = tpu.matmul %168, %10, %cst_66 {dimension_numbers = #tpu.dot_dimension_numbers<[1], [0], [0], [1], [0, 0, 1, 1], [], []>} : vector<8x128xf32>, vector<128x128xf32>, vector<8x128xf32> -> vector<8x128xf32>
      %174 = arith.addf %172, %173 : vector<8x128xf32>
      %175 = arith.negf %174 : vector<8x128xf32>
      %176 = math.exp %175 : vector<8x128xf32>
      %cst_67 = arith.constant 1.000000e+00 : f32
      %177 = vector.broadcast %cst_67 : f32 to vector<8x128xf32>
      %178 = arith.addf %177, %176 : vector<8x128xf32>
      %179 = arith.divf %177, %178 : vector<8x128xf32>
      %180 = math.tanh %174 : vector<8x128xf32>
      %181 = arith.select %16, %180, %179 : vector<8x128xi1>, vector<8x128xf32>
      %c96_i32_68 = arith.constant 96 : i32
      %182 = tpu.dynamic_rotate %181 by %c96_i32_68 dim 1 : vector<8x128xf32>, i32 -> vector<8x128xf32>
      %c64_i32_69 = arith.constant 64 : i32
      %183 = tpu.dynamic_rotate %181 by %c64_i32_69 dim 1 : vector<8x128xf32>, i32 -> vector<8x128xf32>
      %c32_i32_70 = arith.constant 32 : i32
      %184 = tpu.dynamic_rotate %181 by %c32_i32_70 dim 1 : vector<8x128xf32>, i32 -> vector<8x128xf32>
      %185 = arith.mulf %182, %166 : vector<8x128xf32>
      %186 = arith.mulf %181, %183 : vector<8x128xf32>
      %187 = arith.addf %185, %186 : vector<8x128xf32>
      %188 = math.tanh %187 : vector<8x128xf32>
      %189 = arith.mulf %184, %188 : vector<8x128xf32>
      %c8_i32_71 = arith.constant 8 : i32
      %c0_72 = arith.constant 0 : index
      %c0_73 = arith.constant 0 : index
      %190 = vector.load %arg10[%c0_72, %c0_73] : memref<8x128xf32, #tpu.memory_space<vmem>>, vector<8x128xf32>
      tpu.vector_store %arg10[%c0_72, %c0_73], %189 {strides = array<i32>} : memref<8x128xf32, #tpu.memory_space<vmem>>, vector<8x128xf32>,
      %c0_74 = arith.constant 0 : index
      %c0_75 = arith.constant 0 : index
      %191 = vector.load %arg11[%c0_74, %c0_75] : memref<8x128xf32, #tpu.memory_space<vmem>>, vector<8x128xf32>
      tpu.vector_store %arg11[%c0_74, %c0_75], %187 {strides = array<i32>} : memref<8x128xf32, #tpu.memory_space<vmem>>, vector<8x128xf32>,
      %c0_76 = arith.constant 0 : index
      %c0_77 = arith.constant 0 : index
      %192 = vector.load %arg5[%c0_76, %c0_77] : memref<128x128xf32, #tpu.memory_space<vmem>>, vector<128x128xf32>
      %cst_78 = arith.constant dense<0.000000e+00> : vector<8x128xf32>
      %193 = tpu.matmul %189, %192, %cst_78 {dimension_numbers = #tpu.dot_dimension_numbers<[1], [0], [0], [1], [0, 0, 1, 1], [], []>} : vector<8x128xf32>, vector<128x128xf32>, vector<8x128xf32> -> vector<8x128xf32>
      %c0_79 = arith.constant 0 : index
      %c0_80 = arith.constant 0 : index
      %194 = vector.load %arg6[%c0_79, %c0_80] : memref<1x128xf32, #tpu.memory_space<vmem>>, vector<1x128xf32>
      %195 = vector.broadcast %194 : vector<1x128xf32> to vector<8x128xf32>
      %196 = arith.addf %193, %195 : vector<8x128xf32>
      %cst_81 = arith.constant 0.000000e+00 : f32
      %197 = vector.broadcast %cst_81 : f32 to vector<8x128xf32>
      %198 = arith.maximumf %196, %197 : vector<8x128xf32>
      %c0_82 = arith.constant 0 : index
      %c0_83 = arith.constant 0 : index
      %199 = vector.load %arg7[%c0_82, %c0_83] : memref<128x128xf32, #tpu.memory_space<vmem>>, vector<128x128xf32>
      %cst_84 = arith.constant dense<0.000000e+00> : vector<8x128xf32>
      %200 = tpu.matmul %198, %199, %cst_84 {dimension_numbers = #tpu.dot_dimension_numbers<[1], [0], [0], [1], [0, 0, 1, 1], [], []>} : vector<8x128xf32>, vector<128x128xf32>, vector<8x128xf32> -> vector<8x128xf32>
      %c0_85 = arith.constant 0 : index
      %c0_86 = arith.constant 0 : index
      %201 = vector.load %arg8[%c0_85, %c0_86] : memref<1x128xf32, #tpu.memory_space<vmem>>, vector<1x128xf32>
      %202 = vector.broadcast %201 : vector<1x128xf32> to vector<8x128xf32>
      %203 = arith.addf %200, %202 : vector<8x128xf32>
      %c0_87 = arith.constant 0 : index
      %c0_88 = arith.constant 0 : index
      %204 = vector.load %arg9[%c0_87, %c0_88] : memref<8x128xf32, #tpu.memory_space<vmem>>, vector<8x128xf32>
      tpu.vector_store %arg9[%c0_87, %c0_88], %203 {strides = array<i32>} : memref<8x128xf32, #tpu.memory_space<vmem>>, vector<8x128xf32>,
    } else {
    }
    return
  }
  func.func @transform_0(%arg0: i32) -> (i32, i32) {
    %c0_i32 = arith.constant 0 : i32
    %c0_i32_0 = arith.constant 0 : i32
    return %arg0, %c0_i32 : i32, i32
  }
  func.func @transform_1(%arg0: i32) -> (i32, i32) {
    %c0_i32 = arith.constant 0 : i32
    %c0_i32_0 = arith.constant 0 : i32
    %c0_i32_1 = arith.constant 0 : i32
    return %c0_i32, %c0_i32_0 : i32, i32
  }
  func.func @transform_2(%arg0: i32) -> (i32, i32) {
    %c0_i32 = arith.constant 0 : i32
    %c0_i32_0 = arith.constant 0 : i32
    %c0_i32_1 = arith.constant 0 : i32
    return %c0_i32, %c0_i32_0 : i32, i32
  }
  func.func @transform_3(%arg0: i32) -> (i32, i32) {
    %c0_i32 = arith.constant 0 : i32
    %c0_i32_0 = arith.constant 0 : i32
    %c0_i32_1 = arith.constant 0 : i32
    return %c0_i32, %c0_i32_0 : i32, i32
  }
  func.func @transform_4(%arg0: i32) -> (i32, i32) {
    %c0_i32 = arith.constant 0 : i32
    %c0_i32_0 = arith.constant 0 : i32
    %c0_i32_1 = arith.constant 0 : i32
    return %c0_i32, %c0_i32_0 : i32, i32
  }
  func.func @transform_5(%arg0: i32) -> (i32, i32) {
    %c0_i32 = arith.constant 0 : i32
    %c0_i32_0 = arith.constant 0 : i32
    %c0_i32_1 = arith.constant 0 : i32
    return %c0_i32, %c0_i32_0 : i32, i32
  }
  func.func @transform_6(%arg0: i32) -> (i32, i32) {
    %c0_i32 = arith.constant 0 : i32
    %c0_i32_0 = arith.constant 0 : i32
    %c0_i32_1 = arith.constant 0 : i32
    return %c0_i32, %c0_i32_0 : i32, i32
  }
  func.func @transform_7(%arg0: i32) -> (i32, i32) {
    %c0_i32 = arith.constant 0 : i32
    %c0_i32_0 = arith.constant 0 : i32
    %c0_i32_1 = arith.constant 0 : i32
    return %c0_i32, %c0_i32_0 : i32, i32
  }
  func.func @transform_8(%arg0: i32) -> (i32, i32) {
    %c0_i32 = arith.constant 0 : i32
    %c0_i32_0 = arith.constant 0 : i32
    %c0_i32_1 = arith.constant 0 : i32
    return %c0_i32, %c0_i32_0 : i32, i32
  }
}

</mosaic_0001>

<llo_original>
// kernel: tpu_custom_call.1
$region0: #{tpu_custom_call.1}
  #allocation0 [shape = 'u32[]', space=smem, size = 0x4, offset = 0x4, fixed_abs, tag = 'smem constant byte address 0x4 - core index']
  #allocation1 [shape = 'u32[144,128]{1,0:T(1,128)}', space=vmem, size = 0x12000, scoped, tag = 'internal scratch']
  #allocation2 [shape = 'f32[8,128]{1,0:T(8,128)}', space=vmem, size = 0x1000, scoped, tag = 'scratch operand']
  #allocation3 [shape = 'f32[8,128]{1,0:T(8,128)}', space=vmem, size = 0x1000, scoped, tag = 'scratch operand']
  #allocation4 [shape = 'f32[64,128]{1,0:T(8,128)}', space=vmem, size = 0x8000, scoped, tag = 'scratch operand']
  %s0 = inlined_call_operand.hbm [shape: f32[64,128], index: 0, kind: input, shape index: {}]
  %s1 = inlined_call_operand.hbm [shape: f32[128,128], index: 1, kind: input, shape index: {}]
  %s2 = inlined_call_operand.hbm [shape: f32[128,128], index: 2, kind: input, shape index: {}]
  %s3 = inlined_call_operand.vmem [shape: f32[1,128], index: 3, kind: input, shape index: {}]
  %s4 = inlined_call_operand.hbm [shape: f32[128,128], index: 4, kind: input, shape index: {}]
  %s5 = inlined_call_operand.vmem [shape: f32[1,128], index: 5, kind: input, shape index: {}]
  %s6 = inlined_call_operand.hbm [shape: f32[128,128], index: 6, kind: input, shape index: {}]
  %s7 = inlined_call_operand.vmem [shape: f32[1,128], index: 7, kind: input, shape index: {}]
  %s8 = inlined_call_operand.hbm [shape: f32[8,128], index: 8, kind: output, shape index: {}]
  %s9 = sld [smem:[#allocation0]]
  $region70: #{tpu_custom_call.1} parent=0
    _
  %s11 = ssub.s32 1, %s9
  %s12 = scalar_select 0, %s11, %s9
  $region1: #{tpu_custom_call.1} parent=0
    #allocation5 [shape = 'u8[32768]{0}', space=vmem, size = 0x8000, scoped, tag = 'input window, operand 0, single buffered']
    #allocation6 [shape = 's32[1]{0}', space=sflag, size = 0x4, scoped, tag = 'scoped memory for tpu_custom_call.1']
    #allocation7 [shape = 's32[1]{0}', space=sflag, size = 0x4, scoped, tag = 'scoped memory for tpu_custom_call.1']
    #allocation8 [shape = 'u8[65536]{0}', space=vmem, size = 0x10000, scoped, tag = 'input window, operand 1, single buffered']
    #allocation9 [shape = 's32[1]{0}', space=sflag, size = 0x4, scoped, tag = 'scoped memory for tpu_custom_call.1']
    #allocation10 [shape = 'u8[65536]{0}', space=vmem, size = 0x10000, scoped, tag = 'input window, operand 2, single buffered']
    #allocation11 [shape = 'u8[65536]{0}', space=vmem, size = 0x10000, scoped, tag = 'input window, operand 4, single buffered']
    #allocation12 [shape = 's32[1]{0}', space=sflag, size = 0x4, scoped, tag = 'scoped memory for tpu_custom_call.1']
    #allocation13 [shape = 'u8[65536]{0}', space=vmem, size = 0x10000, scoped, tag = 'input window, operand 6, single buffered']
    #allocation14 [shape = 'u8[4096]{0}', space=vmem, size = 0x1000, scoped, tag = 'output window, operand 0, single buffered']
    %13 = vsyncpa [#allocation6], 0
    %14 = vsyncpa [#allocation9], 0
    %15 = vsyncpa [#allocation12], 0
    %16 = vsyncpa [#allocation7], 0
    // Predicated region
    $region2: #{tpu_custom_call.1} parent=1 // pred_check
      _
    $region3: #{tpu_custom_call.1} parent=1 // pred_check_branch
      %18 = sbr.rel (0) target = $region5
    $region4: #{tpu_custom_call.1} parent=1 // pred_region
      %s20 = ssub.s32 1024, 1024
      %21 = vsyncadd [#allocation6], %s20
      %s22 = sshll.u32 [#allocation5], 4
      %s23 = int_to_ptr.vmem [resolvable:$true] %s22
      %28 = dma.hbm_to_vmem [thread:$0]  %s0, 1024, %s23, [#allocation6], 128, 128, 8
    $region5: #{tpu_custom_call.1} parent=1 // pred_fallthru
      _
    // Predicated region
    $region6: #{tpu_custom_call.1} parent=1 // pred_check
      _
    $region7: #{tpu_custom_call.1} parent=1 // pred_check_branch
      %30 = sbr.rel (0) target = $region9
    $region8: #{tpu_custom_call.1} parent=1 // pred_region
      %s32 = ssub.s32 2048, 2048
      %33 = vsyncadd [#allocation9], %s32
      %s34 = sshll.u32 [#allocation8], 4
      %s35 = int_to_ptr.vmem [resolvable:$true] %s34
      %40 = dma.hbm_to_vmem [thread:$0]  %s1, 2048, %s35, [#allocation9], 128, 128, 8
    $region9: #{tpu_custom_call.1} parent=1 // pred_fallthru
      _
    // Predicated region
    $region10: #{tpu_custom_call.1} parent=1 // pred_check
      _
    $region11: #{tpu_custom_call.1} parent=1 // pred_check_branch
      %42 = sbr.rel (0) target = $region13
    $region12: #{tpu_custom_call.1} parent=1 // pred_region
      %s44 = ssub.s32 2048, 2048
      %45 = vsyncadd [#allocation9], %s44
      %s46 = sshll.u32 [#allocation10], 4
      %s47 = int_to_ptr.vmem [resolvable:$true] %s46
      %52 = dma.hbm_to_vmem [thread:$0]  %s2, 2048, %s47, [#allocation9], 128, 128, 8
    $region13: #{tpu_custom_call.1} parent=1 // pred_fallthru
      _
    // Predicated region
    $region14: #{tpu_custom_call.1} parent=1 // pred_check
      _
    $region15: #{tpu_custom_call.1} parent=1 // pred_check_branch
      %54 = sbr.rel (0) target = $region17
    $region16: #{tpu_custom_call.1} parent=1 // pred_region
      _
    $region17: #{tpu_custom_call.1} parent=1 // pred_fallthru
      _
    // Predicated region
    $region18: #{tpu_custom_call.1} parent=1 // pred_check
      _
    $region19: #{tpu_custom_call.1} parent=1 // pred_check_branch
      %56 = sbr.rel (0) target = $region21
    $region20: #{tpu_custom_call.1} parent=1 // pred_region
      %s58 = ssub.s32 2048, 2048
      %59 = vsyncadd [#allocation12], %s58
      %s60 = sshll.u32 [#allocation11], 4
      %s61 = int_to_ptr.vmem [resolvable:$true] %s60
      %66 = dma.hbm_to_vmem [thread:$0]  %s4, 2048, %s61, [#allocation12], 128, 128, 8
    $region21: #{tpu_custom_call.1} parent=1 // pred_fallthru
      _
    // Predicated region
    $region22: #{tpu_custom_call.1} parent=1 // pred_check
      _
    $region23: #{tpu_custom_call.1} parent=1 // pred_check_branch
      %68 = sbr.rel (0) target = $region25
    $region24: #{tpu_custom_call.1} parent=1 // pred_region
      _
    $region25: #{tpu_custom_call.1} parent=1 // pred_fallthru
      _
    // Predicated region
    $region26: #{tpu_custom_call.1} parent=1 // pred_check
      _
    $region27: #{tpu_custom_call.1} parent=1 // pred_check_branch
      %70 = sbr.rel (0) target = $region29
    $region28: #{tpu_custom_call.1} parent=1 // pred_region
      %s72 = ssub.s32 2048, 2048
      %73 = vsyncadd [#allocation12], %s72
      %s74 = sshll.u32 [#allocation13], 4
      %s75 = int_to_ptr.vmem [resolvable:$true] %s74
      %80 = dma.hbm_to_vmem [thread:$0]  %s6, 2048, %s75, [#allocation12], 128, 128, 8
    $region29: #{tpu_custom_call.1} parent=1 // pred_fallthru
      _
    // Predicated region
    $region30: #{tpu_custom_call.1} parent=1 // pred_check
      _
    $region31: #{tpu_custom_call.1} parent=1 // pred_check_branch
      %82 = sbr.rel (0) target = $region33
    $region32: #{tpu_custom_call.1} parent=1 // pred_region
      _
    $region33: #{tpu_custom_call.1} parent=1 // pred_fallthru
      _
    // Predicated region
    $region34: #{tpu_custom_call.1} parent=1 // pred_check
      _
    $region35: #{tpu_custom_call.1} parent=1 // pred_check_branch
      %84 = sbr.rel (0) target = $region37
    $region36: #{tpu_custom_call.1} parent=1 // pred_region
      %85 = dma.done [#allocation6], 1024
    $region37: #{tpu_custom_call.1} parent=1 // pred_fallthru
      _
    // Predicated region
    $region38: #{tpu_custom_call.1} parent=1 // pred_check
      _
    $region39: #{tpu_custom_call.1} parent=1 // pred_check_branch
      %87 = sbr.rel (0) target = $region41
    $region40: #{tpu_custom_call.1} parent=1 // pred_region
      %88 = dma.done [#allocation9], 2048
    $region41: #{tpu_custom_call.1} parent=1 // pred_fallthru
      _
    // Predicated region
    $region42: #{tpu_custom_call.1} parent=1 // pred_check
      _
    $region43: #{tpu_custom_call.1} parent=1 // pred_check_branch
      %90 = sbr.rel (0) target = $region45
    $region44: #{tpu_custom_call.1} parent=1 // pred_region
      %91 = dma.done [#allocation9], 2048
    $region45: #{tpu_custom_call.1} parent=1 // pred_fallthru
      _
    // Predicated region
    $region46: #{tpu_custom_call.1} parent=1 // pred_check
      _
    $region47: #{tpu_custom_call.1} parent=1 // pred_check_branch
      %93 = sbr.rel (0) target = $region49
    $region48: #{tpu_custom_call.1} parent=1 // pred_region
      %94 = dma.done [#allocation12], 2048
    $region49: #{tpu_custom_call.1} parent=1 // pred_fallthru
      _
    // Predicated region
    $region50: #{tpu_custom_call.1} parent=1 // pred_check
      _
    $region51: #{tpu_custom_call.1} parent=1 // pred_check_branch
      %96 = sbr.rel (0) target = $region53
    $region52: #{tpu_custom_call.1} parent=1 // pred_region
      %97 = dma.done [#allocation12], 2048
    $region53: #{tpu_custom_call.1} parent=1 // pred_fallthru
      _
    %p98 = scmp.eq.s32.totalorder 0, 0
    // Predicated region
    $region54: #{tpu_custom_call.1} parent=1 // pred_check
      %p99 = pneg %p98
    $region55: #{tpu_custom_call.1} parent=1 // pred_check_branch
      %101 = sbr.rel (%p99) target = $region57
    $region56: #{tpu_custom_call.1} parent=1 // pred_region
      %102 = vst [vmem:[#allocation2] sm:$0xff] 0.0
      %103 = vst [vmem:[#allocation3] sm:$0xff] 0.0
    $region57: #{tpu_custom_call.1} parent=1 // pred_fallthru
      _
    %v104 = vld [vmem:[#allocation5] sm:$0xff]
    %v105 = vld [vmem:[#allocation5 + $0x8] sm:$0xff]
    %v106 = vld [vmem:[#allocation5 + $0x10] sm:$0xff]
    %v107 = vld [vmem:[#allocation5 + $0x18] sm:$0xff]
    %v108 = vld [vmem:[#allocation5 + $0x20] sm:$0xff]
    %v109 = vld [vmem:[#allocation5 + $0x28] sm:$0xff]
    %v110 = vld [vmem:[#allocation5 + $0x30] sm:$0xff]
    %v111 = vld [vmem:[#allocation5 + $0x38] sm:$0xff]
    %v112 = vld [vmem:[#allocation8] sm:$0xff]
    %v113 = vld [vmem:[#allocation8 + $0x8] sm:$0xff]
    %v114 = vld [vmem:[#allocation8 + $0x10] sm:$0xff]
    %v115 = vld [vmem:[#allocation8 + $0x18] sm:$0xff]
    %v116 = vld [vmem:[#allocation8 + $0x20] sm:$0xff]
    %v117 = vld [vmem:[#allocation8 + $0x28] sm:$0xff]
    %v118 = vld [vmem:[#allocation8 + $0x30] sm:$0xff]
    %v119 = vld [vmem:[#allocation8 + $0x38] sm:$0xff]
    %v120 = vld [vmem:[#allocation8 + $0x40] sm:$0xff]
    %v121 = vld [vmem:[#allocation8 + $0x48] sm:$0xff]
    %v122 = vld [vmem:[#allocation8 + $0x50] sm:$0xff]
    %v123 = vld [vmem:[#allocation8 + $0x58] sm:$0xff]
    %v124 = vld [vmem:[#allocation8 + $0x60] sm:$0xff]
    %v125 = vld [vmem:[#allocation8 + $0x68] sm:$0xff]
    %v126 = vld [vmem:[#allocation8 + $0x70] sm:$0xff]
    %v127 = vld [vmem:[#allocation8 + $0x78] sm:$0xff]
    %v128 = vld [vmem:[%s3] sm:$0x1]
    %v130 = vlaneseq
    %v131 = vshrl.u32 %v130, 7
    %v132 = vsub.s32 0, %v131
    %v133 = vrot.slane %v128, %v132
    %135 = vmatprep.subr.mxu0 0.0
    %136 = vmatpush1.msra.mxu0 %v127
    %137 = vmatprep.subr.mxu0 0.0
    %138 = vmatpush1.msra.mxu0 %v126
    %139 = vmatprep.subr.mxu0 0.0
    %140 = vmatpush1.msra.mxu0 %v125
    %141 = vmatprep.subr.mxu0 0.0
    %142 = vmatpush1.msra.mxu0 %v124
    %143 = vmatprep.subr.mxu0 0.0
    %144 = vmatpush1.msra.mxu0 %v123
    %145 = vmatprep.subr.mxu0 0.0
    %146 = vmatpush1.msra.mxu0 %v122
    %147 = vmatprep.subr.mxu0 0.0
    %148 = vmatpush1.msra.mxu0 %v121
    %149 = vmatprep.subr.mxu0 0.0
    %150 = vmatpush1.msra.mxu0 %v120
    %151 = vmatprep.subr.mxu0 0.0
    %152 = vmatpush1.msra.mxu0 %v119
    %153 = vmatprep.subr.mxu0 0.0
    %154 = vmatpush1.msra.mxu0 %v118
    %155 = vmatprep.subr.mxu0 0.0
    %156 = vmatpush1.msra.mxu0 %v117
    %157 = vmatprep.subr.mxu0 0.0
    %158 = vmatpush1.msra.mxu0 %v116
    %159 = vmatprep.subr.mxu0 0.0
    %160 = vmatpush1.msra.mxu0 %v115
    %161 = vmatprep.subr.mxu0 0.0
    %162 = vmatpush1.msra.mxu0 %v114
    %163 = vmatprep.subr.mxu0 0.0
    %164 = vmatpush1.msra.mxu0 %v113
    %165 = vmatprep.subr.mxu0 0.0
    %166 = vmatpush1.msra.mxu0 %v112
    %167 = vmatprep.subr.mxu0 0.0
    %168 = vmatpush2.msra.mxu0 0.0
    %169 = vmatprep.subr.mxu0 0.0
    %170 = vmatpush2.msra.mxu0 0.0
    %171 = vmatprep.subr.mxu0 0.0
    %172 = vmatpush2.msra.mxu0 0.0
    %173 = vmatprep.subr.mxu0 0.0
    %174 = vmatpush2.msra.mxu0 0.0
    %175 = vmatprep.subr.mxu0 0.0
    %176 = vmatpush2.msra.mxu0 0.0
    %177 = vmatprep.subr.mxu0 0.0
    %178 = vmatpush2.msra.mxu0 0.0
    %179 = vmatprep.subr.mxu0 0.0
    %180 = vmatpush2.msra.mxu0 0.0
    %181 = vmatprep.subr.mxu0 0.0
    %182 = vmatpush2.msra.mxu0 0.0
    %183 = vmatprep.subr.mxu0 0.0
    %184 = vmatpush2.msra.mxu0 0.0
    %185 = vmatprep.subr.mxu0 0.0
    %186 = vmatpush2.msra.mxu0 0.0
    %187 = vmatprep.subr.mxu0 0.0
    %188 = vmatpush2.msra.mxu0 0.0
    %189 = vmatprep.subr.mxu0 0.0
    %190 = vmatpush2.msra.mxu0 0.0
    %191 = vmatprep.subr.mxu0 0.0
    %192 = vmatpush2.msra.mxu0 0.0
    %193 = vmatprep.subr.mxu0 0.0
    %194 = vmatpush2.msra.mxu0 0.0
    %195 = vmatprep.subr.mxu0 0.0
    %196 = vmatpush2.msra.mxu0 0.0
    %197 = vmatprep.subr.mxu0 0.0
    %198 = vmatpush2.msra.mxu0 0.0
    %199 = vmatprep.mubr.f32.mxu0 0.0
    %200 = vmatmul.mubr.f32.gmra.mxu0 %v104
    %v201 = vpop.f32.mrf.mxu0
    %v202 = vadd.f32 %v133, %v201
    %v203 = vpop.f32.mrf.mxu0
    %204 = vmatprep.mubr.f32.mxu0 0.0
    %205 = vmatmul.mubr.f32.gmra.mxu0 %v105
    %v206 = vpop.f32.mrf.mxu0
    %v207 = vadd.f32 %v133, %v206
    %v208 = vpop.f32.mrf.mxu0
    %209 = vmatprep.mubr.f32.mxu0 0.0
    %210 = vmatmul.mubr.f32.gmra.mxu0 %v106
    %v211 = vpop.f32.mrf.mxu0
    %v212 = vadd.f32 %v133, %v211
    %v213 = vpop.f32.mrf.mxu0
    %214 = vmatprep.mubr.f32.mxu0 0.0
    %215 = vmatmul.mubr.f32.gmra.mxu0 %v107
    %v216 = vpop.f32.mrf.mxu0
    %v217 = vadd.f32 %v133, %v216
    %v218 = vpop.f32.mrf.mxu0
    %219 = vmatprep.mubr.f32.mxu0 0.0
    %220 = vmatmul.mubr.f32.gmra.mxu0 %v108
    %v221 = vpop.f32.mrf.mxu0
    %v222 = vadd.f32 %v133, %v221
    %v223 = vpop.f32.mrf.mxu0
    %224 = vmatprep.mubr.f32.mxu0 0.0
    %225 = vmatmul.mubr.f32.gmra.mxu0 %v109
    %v226 = vpop.f32.mrf.mxu0
    %v227 = vadd.f32 %v133, %v226
    %v228 = vpop.f32.mrf.mxu0
    %229 = vmatprep.mubr.f32.mxu0 0.0
    %230 = vmatmul.mubr.f32.gmra.mxu0 %v110
    %v231 = vpop.f32.mrf.mxu0
    %v232 = vadd.f32 %v133, %v231
    %v233 = vpop.f32.mrf.mxu0
    %234 = vmatprep.mubr.f32.mxu0 0.0
    %235 = vmatmul.mubr.f32.gmra.mxu0 %v111
    %v236 = vpop.f32.mrf.mxu0
    %v237 = vadd.f32 %v133, %v236
    %v238 = vpop.f32.mrf.mxu0
    %239 = vdwg.mxu0
    %240 = vst [vmem:[#allocation4] sm:$0xff] %v202
    %241 = vst [vmem:[#allocation4 + $0x8] sm:$0xff] %v207
    %242 = vst [vmem:[#allocation4 + $0x10] sm:$0xff] %v212
    %243 = vst [vmem:[#allocation4 + $0x18] sm:$0xff] %v217
    %244 = vst [vmem:[#allocation4 + $0x20] sm:$0xff] %v222
    %245 = vst [vmem:[#allocation4 + $0x28] sm:$0xff] %v227
    %246 = vst [vmem:[#allocation4 + $0x30] sm:$0xff] %v232
    %247 = vst [vmem:[#allocation4 + $0x38] sm:$0xff] %v237
    %v248 = vld [vmem:[#allocation10] sm:$0xff]
    %v249 = vld [vmem:[#allocation10 + $0x8] sm:$0xff]
    %v250 = vld [vmem:[#allocation10 + $0x10] sm:$0xff]
    %v251 = vld [vmem:[#allocation10 + $0x18] sm:$0xff]
    %v252 = vld [vmem:[#allocation10 + $0x20] sm:$0xff]
    %v253 = vld [vmem:[#allocation10 + $0x28] sm:$0xff]
    %v254 = vld [vmem:[#allocation10 + $0x30] sm:$0xff]
    %v255 = vld [vmem:[#allocation10 + $0x38] sm:$0xff]
    %v256 = vld [vmem:[#allocation10 + $0x40] sm:$0xff]
    %v257 = vld [vmem:[#allocation10 + $0x48] sm:$0xff]
    %v258 = vld [vmem:[#allocation10 + $0x50] sm:$0xff]
    %v259 = vld [vmem:[#allocation10 + $0x58] sm:$0xff]
    %v260 = vld [vmem:[#allocation10 + $0x60] sm:$0xff]
    %v261 = vld [vmem:[#allocation10 + $0x68] sm:$0xff]
    %v262 = vld [vmem:[#allocation10 + $0x70] sm:$0xff]
    %v263 = vld [vmem:[#allocation10 + $0x78] sm:$0xff]
    %v264 = vlaneseq
    %v265 = vand.u32 %v264, 127
    %vm266 = vcmp.ge.s32.totalorder %v265, 64
    %vm267 = vcmp.lt.s32.totalorder %v265, 96
    %vm268 = vmand %vm266, %vm267
    // Predicated region
    $region58: #{tpu_custom_call.1} parent=1 // pred_check
      %p269 = pneg %p98
    $region59: #{tpu_custom_call.1} parent=1 // pred_check_branch
      %271 = sbr.rel (%p269) target = $region61
    $region60: #{tpu_custom_call.1} parent=1 // pred_region
      %v272 = vld [vmem:[#allocation2] sm:$0xff]
      %v273 = vld [vmem:[#allocation3] sm:$0xff]
      %v274 = vld [vmem:[#allocation4] sm:$0xff]
      %275 = vmatprep.subr.mxu0 0.0
      %276 = vmatpush1.msra.mxu0 %v263
      %277 = vmatprep.subr.mxu0 0.0
      %278 = vmatpush1.msra.mxu0 %v262
      %279 = vmatprep.subr.mxu0 0.0
      %280 = vmatpush1.msra.mxu0 %v261
      %281 = vmatprep.subr.mxu0 0.0
      %282 = vmatpush1.msra.mxu0 %v260
      %283 = vmatprep.subr.mxu0 0.0
      %284 = vmatpush1.msra.mxu0 %v259
      %285 = vmatprep.subr.mxu0 0.0
      %286 = vmatpush1.msra.mxu0 %v258
      %287 = vmatprep.subr.mxu0 0.0
      %288 = vmatpush1.msra.mxu0 %v257
      %289 = vmatprep.subr.mxu0 0.0
      %290 = vmatpush1.msra.mxu0 %v256
      %291 = vmatprep.subr.mxu0 0.0
      %292 = vmatpush1.msra.mxu0 %v255
      %293 = vmatprep.subr.mxu0 0.0
      %294 = vmatpush1.msra.mxu0 %v254
      %295 = vmatprep.subr.mxu0 0.0
      %296 = vmatpush1.msra.mxu0 %v253
      %297 = vmatprep.subr.mxu0 0.0
      %298 = vmatpush1.msra.mxu0 %v252
      %299 = vmatprep.subr.mxu0 0.0
      %300 = vmatpush1.msra.mxu0 %v251
      %301 = vmatprep.subr.mxu0 0.0
      %302 = vmatpush1.msra.mxu0 %v250
      %303 = vmatprep.subr.mxu0 0.0
      %304 = vmatpush1.msra.mxu0 %v249
      %305 = vmatprep.subr.mxu0 0.0
      %306 = vmatpush1.msra.mxu0 %v248
      %307 = vmatprep.subr.mxu0 0.0
      %308 = vmatpush2.msra.mxu0 0.0
      %309 = vmatprep.subr.mxu0 0.0
      %310 = vmatpush2.msra.mxu0 0.0
      %311 = vmatprep.subr.mxu0 0.0
      %312 = vmatpush2.msra.mxu0 0.0
      %313 = vmatprep.subr.mxu0 0.0
      %314 = vmatpush2.msra.mxu0 0.0
      %315 = vmatprep.subr.mxu0 0.0
      %316 = vmatpush2.msra.mxu0 0.0
      %317 = vmatprep.subr.mxu0 0.0
      %318 = vmatpush2.msra.mxu0 0.0
      %319 = vmatprep.subr.mxu0 0.0
      %320 = vmatpush2.msra.mxu0 0.0
      %321 = vmatprep.subr.mxu0 0.0
      %322 = vmatpush2.msra.mxu0 0.0
      %323 = vmatprep.subr.mxu0 0.0
      %324 = vmatpush2.msra.mxu0 0.0
      %325 = vmatprep.subr.mxu0 0.0
      %326 = vmatpush2.msra.mxu0 0.0
      %327 = vmatprep.subr.mxu0 0.0
      %328 = vmatpush2.msra.mxu0 0.0
      %329 = vmatprep.subr.mxu0 0.0
      %330 = vmatpush2.msra.mxu0 0.0
      %331 = vmatprep.subr.mxu0 0.0
      %332 = vmatpush2.msra.mxu0 0.0
      %333 = vmatprep.subr.mxu0 0.0
      %334 = vmatpush2.msra.mxu0 0.0
      %335 = vmatprep.subr.mxu0 0.0
      %336 = vmatpush2.msra.mxu0 0.0
      %337 = vmatprep.subr.mxu0 0.0
      %338 = vmatpush2.msra.mxu0 0.0
      %339 = vmatprep.mubr.f32.mxu0 0.0
      %340 = vmatmul.mubr.f32.gmra.mxu0 %v272
      %v341 = vpop.f32.mrf.mxu0
      %v342 = vadd.f32 0.0, %v341
      %v343 = vpop.f32.mrf.mxu0
      %344 = vdwg.mxu0
      %v345 = vadd.f32 %v274, %v342
      %v346 = vxor.u32 %v345, 2147483648
      %v347 = vmul.f32 %v346, 1.442695
      %v348 = vpow.pop %v347
      %v349 = vadd.f32 %v348, 1.0
      %v350 = vrcp.pop %v349
      %v351 = vmul.f32 1.0, %v350
      %v352 = vtanh.pop %v345
      %v353 = vsel %vm268, %v352, %v351
      %354 = vrot.lane.b32.xlu0 %v353, 96
      %v355 = vpop.permute.xlu0 %354
      %356 = vrot.lane.b32.xlu0 %v353, 64
      %v357 = vpop.permute.xlu0 %356
      %358 = vrot.lane.b32.xlu0 %v353, 32
      %v359 = vpop.permute.xlu0 %358
      %v360 = vmul.f32 %v355, %v273
      %v361 = vmul.f32 %v353, %v357
      %v362 = vadd.f32 %v360, %v361
      %v363 = vtanh.pop %v362
      %v364 = vmul.f32 %v359, %v363
      %s365 = scalar_lea.vmem [#allocation4], 8
      %v366 = vld [vmem:[%s365] sm:$0xff]
      %367 = vmatprep.subr.mxu0 0.0
      %368 = vmatpush1.msra.mxu0 %v263
      %369 = vmatprep.subr.mxu0 0.0
      %370 = vmatpush1.msra.mxu0 %v262
      %371 = vmatprep.subr.mxu0 0.0
      %372 = vmatpush1.msra.mxu0 %v261
      %373 = vmatprep.subr.mxu0 0.0
      %374 = vmatpush1.msra.mxu0 %v260
      %375 = vmatprep.subr.mxu0 0.0
      %376 = vmatpush1.msra.mxu0 %v259
      %377 = vmatprep.subr.mxu0 0.0
      %378 = vmatpush1.msra.mxu0 %v258
      %379 = vmatprep.subr.mxu0 0.0
      %380 = vmatpush1.msra.mxu0 %v257
      %381 = vmatprep.subr.mxu0 0.0
      %382 = vmatpush1.msra.mxu0 %v256
      %383 = vmatprep.subr.mxu0 0.0
      %384 = vmatpush1.msra.mxu0 %v255
      %385 = vmatprep.subr.mxu0 0.0
      %386 = vmatpush1.msra.mxu0 %v254
      %387 = vmatprep.subr.mxu0 0.0
      %388 = vmatpush1.msra.mxu0 %v253
      %389 = vmatprep.subr.mxu0 0.0
      %390 = vmatpush1.msra.mxu0 %v252
      %391 = vmatprep.subr.mxu0 0.0
      %392 = vmatpush1.msra.mxu0 %v251
      %393 = vmatprep.subr.mxu0 0.0
      %394 = vmatpush1.msra.mxu0 %v250
      %395 = vmatprep.subr.mxu0 0.0
      %396 = vmatpush1.msra.mxu0 %v249
      %397 = vmatprep.subr.mxu0 0.0
      %398 = vmatpush1.msra.mxu0 %v248
      %399 = vmatprep.subr.mxu0 0.0
      %400 = vmatpush2.msra.mxu0 0.0
      %401 = vmatprep.subr.mxu0 0.0
      %402 = vmatpush2.msra.mxu0 0.0
      %403 = vmatprep.subr.mxu0 0.0
      %404 = vmatpush2.msra.mxu0 0.0
      %405 = vmatprep.subr.mxu0 0.0
      %406 = vmatpush2.msra.mxu0 0.0
      %407 = vmatprep.subr.mxu0 0.0
      %408 = vmatpush2.msra.mxu0 0.0
      %409 = vmatprep.subr.mxu0 0.0
      %410 = vmatpush2.msra.mxu0 0.0
      %411 = vmatprep.subr.mxu0 0.0
      %412 = vmatpush2.msra.mxu0 0.0
      %413 = vmatprep.subr.mxu0 0.0
      %414 = vmatpush2.msra.mxu0 0.0
      %415 = vmatprep.subr.mxu0 0.0
      %416 = vmatpush2.msra.mxu0 0.0
      %417 = vmatprep.subr.mxu0 0.0
      %418 = vmatpush2.msra.mxu0 0.0
      %419 = vmatprep.subr.mxu0 0.0
      %420 = vmatpush2.msra.mxu0 0.0
      %421 = vmatprep.subr.mxu0 0.0
      %422 = vmatpush2.msra.mxu0 0.0
      %423 = vmatprep.subr.mxu0 0.0
      %424 = vmatpush2.msra.mxu0 0.0
      %425 = vmatprep.subr.mxu0 0.0
      %426 = vmatpush2.msra.mxu0 0.0
      %427 = vmatprep.subr.mxu0 0.0
      %428 = vmatpush2.msra.mxu0 0.0
      %429 = vmatprep.subr.mxu0 0.0
      %430 = vmatpush2.msra.mxu0 0.0
      %431 = vmatprep.mubr.f32.mxu0 0.0
      %432 = vmatmul.mubr.f32.gmra.mxu0 %v364
      %v433 = vpop.f32.mrf.mxu0
      %v434 = vadd.f32 0.0, %v433
      %v435 = vpop.f32.mrf.mxu0
      %436 = vdwg.mxu0
      %v437 = vadd.f32 %v366, %v434
      %v438 = vxor.u32 %v437, 2147483648
      %v439 = vmul.f32 %v438, 1.442695
      %v440 = vpow.pop %v439
      %v441 = vadd.f32 %v440, 1.0
      %v442 = vrcp.pop %v441
      %v443 = vmul.f32 1.0, %v442
      %v444 = vtanh.pop %v437
      %v445 = vsel %vm268, %v444, %v443
      %446 = vrot.lane.b32.xlu0 %v445, 96
      %v447 = vpop.permute.xlu0 %446
      %448 = vrot.lane.b32.xlu0 %v445, 64
      %v449 = vpop.permute.xlu0 %448
      %450 = vrot.lane.b32.xlu0 %v445, 32
      %v451 = vpop.permute.xlu0 %450
      %v452 = vmul.f32 %v447, %v362
      %v453 = vmul.f32 %v445, %v449
      %v454 = vadd.f32 %v452, %v453
      %v455 = vtanh.pop %v454
      %v456 = vmul.f32 %v451, %v455
      %s457 = scalar_lea.vmem [#allocation4], 16
      %v458 = vld [vmem:[%s457] sm:$0xff]
      %459 = vmatprep.subr.mxu0 0.0
      %460 = vmatpush1.msra.mxu0 %v263
      %461 = vmatprep.subr.mxu0 0.0
      %462 = vmatpush1.msra.mxu0 %v262
      %463 = vmatprep.subr.mxu0 0.0
      %464 = vmatpush1.msra.mxu0 %v261
      %465 = vmatprep.subr.mxu0 0.0
      %466 = vmatpush1.msra.mxu0 %v260
      %467 = vmatprep.subr.mxu0 0.0
      %468 = vmatpush1.msra.mxu0 %v259
      %469 = vmatprep.subr.mxu0 0.0
      %470 = vmatpush1.msra.mxu0 %v258
      %471 = vmatprep.subr.mxu0 0.0
      %472 = vmatpush1.msra.mxu0 %v257
      %473 = vmatprep.subr.mxu0 0.0
      %474 = vmatpush1.msra.mxu0 %v256
      %475 = vmatprep.subr.mxu0 0.0
      %476 = vmatpush1.msra.mxu0 %v255
      %477 = vmatprep.subr.mxu0 0.0
      %478 = vmatpush1.msra.mxu0 %v254
      %479 = vmatprep.subr.mxu0 0.0
      %480 = vmatpush1.msra.mxu0 %v253
      %481 = vmatprep.subr.mxu0 0.0
      %482 = vmatpush1.msra.mxu0 %v252
      %483 = vmatprep.subr.mxu0 0.0
      %484 = vmatpush1.msra.mxu0 %v251
      %485 = vmatprep.subr.mxu0 0.0
      %486 = vmatpush1.msra.mxu0 %v250
      %487 = vmatprep.subr.mxu0 0.0
      %488 = vmatpush1.msra.mxu0 %v249
      %489 = vmatprep.subr.mxu0 0.0
      %490 = vmatpush1.msra.mxu0 %v248
      %491 = vmatprep.subr.mxu0 0.0
      %492 = vmatpush2.msra.mxu0 0.0
      %493 = vmatprep.subr.mxu0 0.0
      %494 = vmatpush2.msra.mxu0 0.0
      %495 = vmatprep.subr.mxu0 0.0
      %496 = vmatpush2.msra.mxu0 0.0
      %497 = vmatprep.subr.mxu0 0.0
      %498 = vmatpush2.msra.mxu0 0.0
      %499 = vmatprep.subr.mxu0 0.0
      %500 = vmatpush2.msra.mxu0 0.0
      %501 = vmatprep.subr.mxu0 0.0
      %502 = vmatpush2.msra.mxu0 0.0
      %503 = vmatprep.subr.mxu0 0.0
      %504 = vmatpush2.msra.mxu0 0.0
      %505 = vmatprep.subr.mxu0 0.0
      %506 = vmatpush2.msra.mxu0 0.0
      %507 = vmatprep.subr.mxu0 0.0
      %508 = vmatpush2.msra.mxu0 0.0
      %509 = vmatprep.subr.mxu0 0.0
      %510 = vmatpush2.msra.mxu0 0.0
      %511 = vmatprep.subr.mxu0 0.0
      %512 = vmatpush2.msra.mxu0 0.0
      %513 = vmatprep.subr.mxu0 0.0
      %514 = vmatpush2.msra.mxu0 0.0
      %515 = vmatprep.subr.mxu0 0.0
      %516 = vmatpush2.msra.mxu0 0.0
      %517 = vmatprep.subr.mxu0 0.0
      %518 = vmatpush2.msra.mxu0 0.0
      %519 = vmatprep.subr.mxu0 0.0
      %520 = vmatpush2.msra.mxu0 0.0
      %521 = vmatprep.subr.mxu0 0.0
      %522 = vmatpush2.msra.mxu0 0.0
      %523 = vmatprep.mubr.f32.mxu0 0.0
      %524 = vmatmul.mubr.f32.gmra.mxu0 %v456
      %v525 = vpop.f32.mrf.mxu0
      %v526 = vadd.f32 0.0, %v525
      %v527 = vpop.f32.mrf.mxu0
      %528 = vdwg.mxu0
      %v529 = vadd.f32 %v458, %v526
      %v530 = vxor.u32 %v529, 2147483648
      %v531 = vmul.f32 %v530, 1.442695
      %v532 = vpow.pop %v531
      %v533 = vadd.f32 %v532, 1.0
      %v534 = vrcp.pop %v533
      %v535 = vmul.f32 1.0, %v534
      %v536 = vtanh.pop %v529
      %v537 = vsel %vm268, %v536, %v535
      %538 = vrot.lane.b32.xlu0 %v537, 96
      %v539 = vpop.permute.xlu0 %538
      %540 = vrot.lane.b32.xlu0 %v537, 64
      %v541 = vpop.permute.xlu0 %540
      %542 = vrot.lane.b32.xlu0 %v537, 32
      %v543 = vpop.permute.xlu0 %542
      %v544 = vmul.f32 %v539, %v454
      %v545 = vmul.f32 %v537, %v541
      %v546 = vadd.f32 %v544, %v545
      %v547 = vtanh.pop %v546
      %v548 = vmul.f32 %v543, %v547
      %s549 = scalar_lea.vmem [#allocation4], 24
      %v550 = vld [vmem:[%s549] sm:$0xff]
      %551 = vmatprep.subr.mxu0 0.0
      %552 = vmatpush1.msra.mxu0 %v263
      %553 = vmatprep.subr.mxu0 0.0
      %554 = vmatpush1.msra.mxu0 %v262
      %555 = vmatprep.subr.mxu0 0.0
      %556 = vmatpush1.msra.mxu0 %v261
      %557 = vmatprep.subr.mxu0 0.0
      %558 = vmatpush1.msra.mxu0 %v260
      %559 = vmatprep.subr.mxu0 0.0
      %560 = vmatpush1.msra.mxu0 %v259
      %561 = vmatprep.subr.mxu0 0.0
      %562 = vmatpush1.msra.mxu0 %v258
      %563 = vmatprep.subr.mxu0 0.0
      %564 = vmatpush1.msra.mxu0 %v257
      %565 = vmatprep.subr.mxu0 0.0
      %566 = vmatpush1.msra.mxu0 %v256
      %567 = vmatprep.subr.mxu0 0.0
      %568 = vmatpush1.msra.mxu0 %v255
      %569 = vmatprep.subr.mxu0 0.0
      %570 = vmatpush1.msra.mxu0 %v254
      %571 = vmatprep.subr.mxu0 0.0
      %572 = vmatpush1.msra.mxu0 %v253
      %573 = vmatprep.subr.mxu0 0.0
      %574 = vmatpush1.msra.mxu0 %v252
      %575 = vmatprep.subr.mxu0 0.0
      %576 = vmatpush1.msra.mxu0 %v251
      %577 = vmatprep.subr.mxu0 0.0
      %578 = vmatpush1.msra.mxu0 %v250
      %579 = vmatprep.subr.mxu0 0.0
      %580 = vmatpush1.msra.mxu0 %v249
      %581 = vmatprep.subr.mxu0 0.0
      %582 = vmatpush1.msra.mxu0 %v248
      %583 = vmatprep.subr.mxu0 0.0
      %584 = vmatpush2.msra.mxu0 0.0
      %585 = vmatprep.subr.mxu0 0.0
      %586 = vmatpush2.msra.mxu0 0.0
      %587 = vmatprep.subr.mxu0 0.0
      %588 = vmatpush2.msra.mxu0 0.0
      %589 = vmatprep.subr.mxu0 0.0
      %590 = vmatpush2.msra.mxu0 0.0
      %591 = vmatprep.subr.mxu0 0.0
      %592 = vmatpush2.msra.mxu0 0.0
      %593 = vmatprep.subr.mxu0 0.0
      %594 = vmatpush2.msra.mxu0 0.0
      %595 = vmatprep.subr.mxu0 0.0
      %596 = vmatpush2.msra.mxu0 0.0
      %597 = vmatprep.subr.mxu0 0.0
      %598 = vmatpush2.msra.mxu0 0.0
      %599 = vmatprep.subr.mxu0 0.0
      %600 = vmatpush2.msra.mxu0 0.0
      %601 = vmatprep.subr.mxu0 0.0
      %602 = vmatpush2.msra.mxu0 0.0
      %603 = vmatprep.subr.mxu0 0.0
      %604 = vmatpush2.msra.mxu0 0.0
      %605 = vmatprep.subr.mxu0 0.0
      %606 = vmatpush2.msra.mxu0 0.0
      %607 = vmatprep.subr.mxu0 0.0
      %608 = vmatpush2.msra.mxu0 0.0
      %609 = vmatprep.subr.mxu0 0.0
      %610 = vmatpush2.msra.mxu0 0.0
      %611 = vmatprep.subr.mxu0 0.0
      %612 = vmatpush2.msra.mxu0 0.0
      %613 = vmatprep.subr.mxu0 0.0
      %614 = vmatpush2.msra.mxu0 0.0
      %615 = vmatprep.mubr.f32.mxu0 0.0
      %616 = vmatmul.mubr.f32.gmra.mxu0 %v548
      %v617 = vpop.f32.mrf.mxu0
      %v618 = vadd.f32 0.0, %v617
      %v619 = vpop.f32.mrf.mxu0
      %620 = vdwg.mxu0
      %v621 = vadd.f32 %v550, %v618
      %v622 = vxor.u32 %v621, 2147483648
      %v623 = vmul.f32 %v622, 1.442695
      %v624 = vpow.pop %v623
      %v625 = vadd.f32 %v624, 1.0
      %v626 = vrcp.pop %v625
      %v627 = vmul.f32 1.0, %v626
      %v628 = vtanh.pop %v621
      %v629 = vsel %vm268, %v628, %v627
      %630 = vrot.lane.b32.xlu0 %v629, 96
      %v631 = vpop.permute.xlu0 %630
      %632 = vrot.lane.b32.xlu0 %v629, 64
      %v633 = vpop.permute.xlu0 %632
      %634 = vrot.lane.b32.xlu0 %v629, 32
      %v635 = vpop.permute.xlu0 %634
      %v636 = vmul.f32 %v631, %v546
      %v637 = vmul.f32 %v629, %v633
      %v638 = vadd.f32 %v636, %v637
      %v639 = vtanh.pop %v638
      %v640 = vmul.f32 %v635, %v639
      %s641 = scalar_lea.vmem [#allocation4], 32
      %v642 = vld [vmem:[%s641] sm:$0xff]
      %643 = vmatprep.subr.mxu0 0.0
      %644 = vmatpush1.msra.mxu0 %v263
      %645 = vmatprep.subr.mxu0 0.0
      %646 = vmatpush1.msra.mxu0 %v262
      %647 = vmatprep.subr.mxu0 0.0
      %648 = vmatpush1.msra.mxu0 %v261
      %649 = vmatprep.subr.mxu0 0.0
      %650 = vmatpush1.msra.mxu0 %v260
      %651 = vmatprep.subr.mxu0 0.0
      %652 = vmatpush1.msra.mxu0 %v259
      %653 = vmatprep.subr.mxu0 0.0
      %654 = vmatpush1.msra.mxu0 %v258
      %655 = vmatprep.subr.mxu0 0.0
      %656 = vmatpush1.msra.mxu0 %v257
      %657 = vmatprep.subr.mxu0 0.0
      %658 = vmatpush1.msra.mxu0 %v256
      %659 = vmatprep.subr.mxu0 0.0
      %660 = vmatpush1.msra.mxu0 %v255
      %661 = vmatprep.subr.mxu0 0.0
      %662 = vmatpush1.msra.mxu0 %v254
      %663 = vmatprep.subr.mxu0 0.0
      %664 = vmatpush1.msra.mxu0 %v253
      %665 = vmatprep.subr.mxu0 0.0
      %666 = vmatpush1.msra.mxu0 %v252
      %667 = vmatprep.subr.mxu0 0.0
      %668 = vmatpush1.msra.mxu0 %v251
      %669 = vmatprep.subr.mxu0 0.0
      %670 = vmatpush1.msra.mxu0 %v250
      %671 = vmatprep.subr.mxu0 0.0
      %672 = vmatpush1.msra.mxu0 %v249
      %673 = vmatprep.subr.mxu0 0.0
      %674 = vmatpush1.msra.mxu0 %v248
      %675 = vmatprep.subr.mxu0 0.0
      %676 = vmatpush2.msra.mxu0 0.0
      %677 = vmatprep.subr.mxu0 0.0
      %678 = vmatpush2.msra.mxu0 0.0
      %679 = vmatprep.subr.mxu0 0.0
      %680 = vmatpush2.msra.mxu0 0.0
      %681 = vmatprep.subr.mxu0 0.0
      %682 = vmatpush2.msra.mxu0 0.0
      %683 = vmatprep.subr.mxu0 0.0
      %684 = vmatpush2.msra.mxu0 0.0
      %685 = vmatprep.subr.mxu0 0.0
      %686 = vmatpush2.msra.mxu0 0.0
      %687 = vmatprep.subr.mxu0 0.0
      %688 = vmatpush2.msra.mxu0 0.0
      %689 = vmatprep.subr.mxu0 0.0
      %690 = vmatpush2.msra.mxu0 0.0
      %691 = vmatprep.subr.mxu0 0.0
      %692 = vmatpush2.msra.mxu0 0.0
      %693 = vmatprep.subr.mxu0 0.0
      %694 = vmatpush2.msra.mxu0 0.0
      %695 = vmatprep.subr.mxu0 0.0
      %696 = vmatpush2.msra.mxu0 0.0
      %697 = vmatprep.subr.mxu0 0.0
      %698 = vmatpush2.msra.mxu0 0.0
      %699 = vmatprep.subr.mxu0 0.0
      %700 = vmatpush2.msra.mxu0 0.0
      %701 = vmatprep.subr.mxu0 0.0
      %702 = vmatpush2.msra.mxu0 0.0
      %703 = vmatprep.subr.mxu0 0.0
      %704 = vmatpush2.msra.mxu0 0.0
      %705 = vmatprep.subr.mxu0 0.0
      %706 = vmatpush2.msra.mxu0 0.0
      %707 = vmatprep.mubr.f32.mxu0 0.0
      %708 = vmatmul.mubr.f32.gmra.mxu0 %v640
      %v709 = vpop.f32.mrf.mxu0
      %v710 = vadd.f32 0.0, %v709
      %v711 = vpop.f32.mrf.mxu0
      %712 = vdwg.mxu0
      %v713 = vadd.f32 %v642, %v710
      %v714 = vxor.u32 %v713, 2147483648
      %v715 = vmul.f32 %v714, 1.442695
      %v716 = vpow.pop %v715
      %v717 = vadd.f32 %v716, 1.0
      %v718 = vrcp.pop %v717
      %v719 = vmul.f32 1.0, %v718
      %v720 = vtanh.pop %v713
      %v721 = vsel %vm268, %v720, %v719
      %722 = vrot.lane.b32.xlu0 %v721, 96
      %v723 = vpop.permute.xlu0 %722
      %724 = vrot.lane.b32.xlu0 %v721, 64
      %v725 = vpop.permute.xlu0 %724
      %726 = vrot.lane.b32.xlu0 %v721, 32
      %v727 = vpop.permute.xlu0 %726
      %v728 = vmul.f32 %v723, %v638
      %v729 = vmul.f32 %v721, %v725
      %v730 = vadd.f32 %v728, %v729
      %v731 = vtanh.pop %v730
      %v732 = vmul.f32 %v727, %v731
      %s733 = scalar_lea.vmem [#allocation4], 40
      %v734 = vld [vmem:[%s733] sm:$0xff]
      %735 = vmatprep.subr.mxu0 0.0
      %736 = vmatpush1.msra.mxu0 %v263
      %737 = vmatprep.subr.mxu0 0.0
      %738 = vmatpush1.msra.mxu0 %v262
      %739 = vmatprep.subr.mxu0 0.0
      %740 = vmatpush1.msra.mxu0 %v261
      %741 = vmatprep.subr.mxu0 0.0
      %742 = vmatpush1.msra.mxu0 %v260
      %743 = vmatprep.subr.mxu0 0.0
      %744 = vmatpush1.msra.mxu0 %v259
      %745 = vmatprep.subr.mxu0 0.0
      %746 = vmatpush1.msra.mxu0 %v258
      %747 = vmatprep.subr.mxu0 0.0
      %748 = vmatpush1.msra.mxu0 %v257
      %749 = vmatprep.subr.mxu0 0.0
      %750 = vmatpush1.msra.mxu0 %v256
      %751 = vmatprep.subr.mxu0 0.0
      %752 = vmatpush1.msra.mxu0 %v255
      %753 = vmatprep.subr.mxu0 0.0
      %754 = vmatpush1.msra.mxu0 %v254
      %755 = vmatprep.subr.mxu0 0.0
      %756 = vmatpush1.msra.mxu0 %v253
      %757 = vmatprep.subr.mxu0 0.0
      %758 = vmatpush1.msra.mxu0 %v252
      %759 = vmatprep.subr.mxu0 0.0
      %760 = vmatpush1.msra.mxu0 %v251
      %761 = vmatprep.subr.mxu0 0.0
      %762 = vmatpush1.msra.mxu0 %v250
      %763 = vmatprep.subr.mxu0 0.0
      %764 = vmatpush1.msra.mxu0 %v249
      %765 = vmatprep.subr.mxu0 0.0
      %766 = vmatpush1.msra.mxu0 %v248
      %767 = vmatprep.subr.mxu0 0.0
      %768 = vmatpush2.msra.mxu0 0.0
      %769 = vmatprep.subr.mxu0 0.0
      %770 = vmatpush2.msra.mxu0 0.0
      %771 = vmatprep.subr.mxu0 0.0
      %772 = vmatpush2.msra.mxu0 0.0
      %773 = vmatprep.subr.mxu0 0.0
      %774 = vmatpush2.msra.mxu0 0.0
      %775 = vmatprep.subr.mxu0 0.0
      %776 = vmatpush2.msra.mxu0 0.0
      %777 = vmatprep.subr.mxu0 0.0
      %778 = vmatpush2.msra.mxu0 0.0
      %779 = vmatprep.subr.mxu0 0.0
      %780 = vmatpush2.msra.mxu0 0.0
      %781 = vmatprep.subr.mxu0 0.0
      %782 = vmatpush2.msra.mxu0 0.0
      %783 = vmatprep.subr.mxu0 0.0
      %784 = vmatpush2.msra.mxu0 0.0
      %785 = vmatprep.subr.mxu0 0.0
      %786 = vmatpush2.msra.mxu0 0.0
      %787 = vmatprep.subr.mxu0 0.0
      %788 = vmatpush2.msra.mxu0 0.0
      %789 = vmatprep.subr.mxu0 0.0
      %790 = vmatpush2.msra.mxu0 0.0
      %791 = vmatprep.subr.mxu0 0.0
      %792 = vmatpush2.msra.mxu0 0.0
      %793 = vmatprep.subr.mxu0 0.0
      %794 = vmatpush2.msra.mxu0 0.0
      %795 = vmatprep.subr.mxu0 0.0
      %796 = vmatpush2.msra.mxu0 0.0
      %797 = vmatprep.subr.mxu0 0.0
      %798 = vmatpush2.msra.mxu0 0.0
      %799 = vmatprep.mubr.f32.mxu0 0.0
      %800 = vmatmul.mubr.f32.gmra.mxu0 %v732
      %v801 = vpop.f32.mrf.mxu0
      %v802 = vadd.f32 0.0, %v801
      %v803 = vpop.f32.mrf.mxu0
      %804 = vdwg.mxu0
      %v805 = vadd.f32 %v734, %v802
      %v806 = vxor.u32 %v805, 2147483648
      %v807 = vmul.f32 %v806, 1.442695
      %v808 = vpow.pop %v807
      %v809 = vadd.f32 %v808, 1.0
      %v810 = vrcp.pop %v809
      %v811 = vmul.f32 1.0, %v810
      %v812 = vtanh.pop %v805
      %v813 = vsel %vm268, %v812, %v811
      %814 = vrot.lane.b32.xlu0 %v813, 96
      %v815 = vpop.permute.xlu0 %814
      %816 = vrot.lane.b32.xlu0 %v813, 64
      %v817 = vpop.permute.xlu0 %816
      %818 = vrot.lane.b32.xlu0 %v813, 32
      %v819 = vpop.permute.xlu0 %818
      %v820 = vmul.f32 %v815, %v730
      %v821 = vmul.f32 %v813, %v817
      %v822 = vadd.f32 %v820, %v821
      %v823 = vtanh.pop %v822
      %v824 = vmul.f32 %v819, %v823
      %s825 = scalar_lea.vmem [#allocation4], 48
      %v826 = vld [vmem:[%s825] sm:$0xff]
      %827 = vmatprep.subr.mxu0 0.0
      %828 = vmatpush1.msra.mxu0 %v263
      %829 = vmatprep.subr.mxu0 0.0
      %830 = vmatpush1.msra.mxu0 %v262
      %831 = vmatprep.subr.mxu0 0.0
      %832 = vmatpush1.msra.mxu0 %v261
      %833 = vmatprep.subr.mxu0 0.0
      %834 = vmatpush1.msra.mxu0 %v260
      %835 = vmatprep.subr.mxu0 0.0
      %836 = vmatpush1.msra.mxu0 %v259
      %837 = vmatprep.subr.mxu0 0.0
      %838 = vmatpush1.msra.mxu0 %v258
      %839 = vmatprep.subr.mxu0 0.0
      %840 = vmatpush1.msra.mxu0 %v257
      %841 = vmatprep.subr.mxu0 0.0
      %842 = vmatpush1.msra.mxu0 %v256
      %843 = vmatprep.subr.mxu0 0.0
      %844 = vmatpush1.msra.mxu0 %v255
      %845 = vmatprep.subr.mxu0 0.0
      %846 = vmatpush1.msra.mxu0 %v254
      %847 = vmatprep.subr.mxu0 0.0
      %848 = vmatpush1.msra.mxu0 %v253
      %849 = vmatprep.subr.mxu0 0.0
      %850 = vmatpush1.msra.mxu0 %v252
      %851 = vmatprep.subr.mxu0 0.0
      %852 = vmatpush1.msra.mxu0 %v251
      %853 = vmatprep.subr.mxu0 0.0
      %854 = vmatpush1.msra.mxu0 %v250
      %855 = vmatprep.subr.mxu0 0.0
      %856 = vmatpush1.msra.mxu0 %v249
      %857 = vmatprep.subr.mxu0 0.0
      %858 = vmatpush1.msra.mxu0 %v248
      %859 = vmatprep.subr.mxu0 0.0
      %860 = vmatpush2.msra.mxu0 0.0
      %861 = vmatprep.subr.mxu0 0.0
      %862 = vmatpush2.msra.mxu0 0.0
      %863 = vmatprep.subr.mxu0 0.0
      %864 = vmatpush2.msra.mxu0 0.0
      %865 = vmatprep.subr.mxu0 0.0
      %866 = vmatpush2.msra.mxu0 0.0
      %867 = vmatprep.subr.mxu0 0.0
      %868 = vmatpush2.msra.mxu0 0.0
      %869 = vmatprep.subr.mxu0 0.0
      %870 = vmatpush2.msra.mxu0 0.0
      %871 = vmatprep.subr.mxu0 0.0
      %872 = vmatpush2.msra.mxu0 0.0
      %873 = vmatprep.subr.mxu0 0.0
      %874 = vmatpush2.msra.mxu0 0.0
      %875 = vmatprep.subr.mxu0 0.0
      %876 = vmatpush2.msra.mxu0 0.0
      %877 = vmatprep.subr.mxu0 0.0
      %878 = vmatpush2.msra.mxu0 0.0
      %879 = vmatprep.subr.mxu0 0.0
      %880 = vmatpush2.msra.mxu0 0.0
      %881 = vmatprep.subr.mxu0 0.0
      %882 = vmatpush2.msra.mxu0 0.0
      %883 = vmatprep.subr.mxu0 0.0
      %884 = vmatpush2.msra.mxu0 0.0
      %885 = vmatprep.subr.mxu0 0.0
      %886 = vmatpush2.msra.mxu0 0.0
      %887 = vmatprep.subr.mxu0 0.0
      %888 = vmatpush2.msra.mxu0 0.0
      %889 = vmatprep.subr.mxu0 0.0
      %890 = vmatpush2.msra.mxu0 0.0
      %891 = vmatprep.mubr.f32.mxu0 0.0
      %892 = vmatmul.mubr.f32.gmra.mxu0 %v824
      %v893 = vpop.f32.mrf.mxu0
      %v894 = vadd.f32 0.0, %v893
      %v895 = vpop.f32.mrf.mxu0
      %896 = vdwg.mxu0
      %v897 = vadd.f32 %v826, %v894
      %v898 = vxor.u32 %v897, 2147483648
      %v899 = vmul.f32 %v898, 1.442695
      %v900 = vpow.pop %v899
      %v901 = vadd.f32 %v900, 1.0
      %v902 = vrcp.pop %v901
      %v903 = vmul.f32 1.0, %v902
      %v904 = vtanh.pop %v897
      %v905 = vsel %vm268, %v904, %v903
      %906 = vrot.lane.b32.xlu0 %v905, 96
      %v907 = vpop.permute.xlu0 %906
      %908 = vrot.lane.b32.xlu0 %v905, 64
      %v909 = vpop.permute.xlu0 %908
      %910 = vrot.lane.b32.xlu0 %v905, 32
      %v911 = vpop.permute.xlu0 %910
      %v912 = vmul.f32 %v907, %v822
      %v913 = vmul.f32 %v905, %v909
      %v914 = vadd.f32 %v912, %v913
      %v915 = vtanh.pop %v914
      %v916 = vmul.f32 %v911, %v915
      %s917 = scalar_lea.vmem [#allocation4], 56
      %v918 = vld [vmem:[%s917] sm:$0xff]
      %919 = vmatprep.subr.mxu0 0.0
      %920 = vmatpush1.msra.mxu0 %v263
      %921 = vmatprep.subr.mxu0 0.0
      %922 = vmatpush1.msra.mxu0 %v262
      %923 = vmatprep.subr.mxu0 0.0
      %924 = vmatpush1.msra.mxu0 %v261
      %925 = vmatprep.subr.mxu0 0.0
      %926 = vmatpush1.msra.mxu0 %v260
      %927 = vmatprep.subr.mxu0 0.0
      %928 = vmatpush1.msra.mxu0 %v259
      %929 = vmatprep.subr.mxu0 0.0
      %930 = vmatpush1.msra.mxu0 %v258
      %931 = vmatprep.subr.mxu0 0.0
      %932 = vmatpush1.msra.mxu0 %v257
      %933 = vmatprep.subr.mxu0 0.0
      %934 = vmatpush1.msra.mxu0 %v256
      %935 = vmatprep.subr.mxu0 0.0
      %936 = vmatpush1.msra.mxu0 %v255
      %937 = vmatprep.subr.mxu0 0.0
      %938 = vmatpush1.msra.mxu0 %v254
      %939 = vmatprep.subr.mxu0 0.0
      %940 = vmatpush1.msra.mxu0 %v253
      %941 = vmatprep.subr.mxu0 0.0
      %942 = vmatpush1.msra.mxu0 %v252
      %943 = vmatprep.subr.mxu0 0.0
      %944 = vmatpush1.msra.mxu0 %v251
      %945 = vmatprep.subr.mxu0 0.0
      %946 = vmatpush1.msra.mxu0 %v250
      %947 = vmatprep.subr.mxu0 0.0
      %948 = vmatpush1.msra.mxu0 %v249
      %949 = vmatprep.subr.mxu0 0.0
      %950 = vmatpush1.msra.mxu0 %v248
      %951 = vmatprep.subr.mxu0 0.0
      %952 = vmatpush2.msra.mxu0 0.0
      %953 = vmatprep.subr.mxu0 0.0
      %954 = vmatpush2.msra.mxu0 0.0
      %955 = vmatprep.subr.mxu0 0.0
      %956 = vmatpush2.msra.mxu0 0.0
      %957 = vmatprep.subr.mxu0 0.0
      %958 = vmatpush2.msra.mxu0 0.0
      %959 = vmatprep.subr.mxu0 0.0
      %960 = vmatpush2.msra.mxu0 0.0
      %961 = vmatprep.subr.mxu0 0.0
      %962 = vmatpush2.msra.mxu0 0.0
      %963 = vmatprep.subr.mxu0 0.0
      %964 = vmatpush2.msra.mxu0 0.0
      %965 = vmatprep.subr.mxu0 0.0
      %966 = vmatpush2.msra.mxu0 0.0
      %967 = vmatprep.subr.mxu0 0.0
      %968 = vmatpush2.msra.mxu0 0.0
      %969 = vmatprep.subr.mxu0 0.0
      %970 = vmatpush2.msra.mxu0 0.0
      %971 = vmatprep.subr.mxu0 0.0
      %972 = vmatpush2.msra.mxu0 0.0
      %973 = vmatprep.subr.mxu0 0.0
      %974 = vmatpush2.msra.mxu0 0.0
      %975 = vmatprep.subr.mxu0 0.0
      %976 = vmatpush2.msra.mxu0 0.0
      %977 = vmatprep.subr.mxu0 0.0
      %978 = vmatpush2.msra.mxu0 0.0
      %979 = vmatprep.subr.mxu0 0.0
      %980 = vmatpush2.msra.mxu0 0.0
      %981 = vmatprep.subr.mxu0 0.0
      %982 = vmatpush2.msra.mxu0 0.0
      %983 = vmatprep.mubr.f32.mxu0 0.0
      %984 = vmatmul.mubr.f32.gmra.mxu0 %v916
      %v985 = vpop.f32.mrf.mxu0
      %v986 = vadd.f32 0.0, %v985
      %v987 = vpop.f32.mrf.mxu0
      %988 = vdwg.mxu0
      %v989 = vadd.f32 %v918, %v986
      %v990 = vxor.u32 %v989, 2147483648
      %v991 = vmul.f32 %v990, 1.442695
      %v992 = vpow.pop %v991
      %v993 = vadd.f32 %v992, 1.0
      %v994 = vrcp.pop %v993
      %v995 = vmul.f32 1.0, %v994
      %v996 = vtanh.pop %v989
      %v997 = vsel %vm268, %v996, %v995
      %998 = vrot.lane.b32.xlu0 %v997, 96
      %v999 = vpop.permute.xlu0 %998
      %1000 = vrot.lane.b32.xlu0 %v997, 64
      %v1001 = vpop.permute.xlu0 %1000
      %1002 = vrot.lane.b32.xlu0 %v997, 32
      %v1003 = vpop.permute.xlu0 %1002
      %v1004 = vmul.f32 %v999, %v914
      %v1005 = vmul.f32 %v997, %v1001
      %v1006 = vadd.f32 %v1004, %v1005
      %v1007 = vtanh.pop %v1006
      %v1008 = vmul.f32 %v1003, %v1007
      %1009 = vst [vmem:[#allocation2] sm:$0xff] %v1008
      %1010 = vst [vmem:[#allocation3] sm:$0xff] %v1006
      %v1011 = vld [vmem:[#allocation11] sm:$0xff]
      %v1012 = vld [vmem:[#allocation11 + $0x8] sm:$0xff]
      %v1013 = vld [vmem:[#allocation11 + $0x10] sm:$0xff]
      %v1014 = vld [vmem:[#allocation11 + $0x18] sm:$0xff]
      %v1015 = vld [vmem:[#allocation11 + $0x20] sm:$0xff]
      %v1016 = vld [vmem:[#allocation11 + $0x28] sm:$0xff]
      %v1017 = vld [vmem:[#allocation11 + $0x30] sm:$0xff]
      %v1018 = vld [vmem:[#allocation11 + $0x38] sm:$0xff]
      %v1019 = vld [vmem:[#allocation11 + $0x40] sm:$0xff]
      %v1020 = vld [vmem:[#allocation11 + $0x48] sm:$0xff]
      %v1021 = vld [vmem:[#allocation11 + $0x50] sm:$0xff]
      %v1022 = vld [vmem:[#allocation11 + $0x58] sm:$0xff]
      %v1023 = vld [vmem:[#allocation11 + $0x60] sm:$0xff]
      %v1024 = vld [vmem:[#allocation11 + $0x68] sm:$0xff]
      %v1025 = vld [vmem:[#allocation11 + $0x70] sm:$0xff]
      %v1026 = vld [vmem:[#allocation11 + $0x78] sm:$0xff]
      %v1027 = vld [vmem:[%s5] sm:$0x1]
      %v1029 = vlaneseq
      %v1030 = vshrl.u32 %v1029, 7
      %v1031 = vsub.s32 0, %v1030
      %v1032 = vrot.slane %v1027, %v1031
      %1034 = vmatprep.subr.mxu0 0.0
      %1035 = vmatpush1.msra.mxu0 %v1026
      %1036 = vmatprep.subr.mxu0 0.0
      %1037 = vmatpush1.msra.mxu0 %v1025
      %1038 = vmatprep.subr.mxu0 0.0
      %1039 = vmatpush1.msra.mxu0 %v1024
      %1040 = vmatprep.subr.mxu0 0.0
      %1041 = vmatpush1.msra.mxu0 %v1023
      %1042 = vmatprep.subr.mxu0 0.0
      %1043 = vmatpush1.msra.mxu0 %v1022
      %1044 = vmatprep.subr.mxu0 0.0
      %1045 = vmatpush1.msra.mxu0 %v1021
      %1046 = vmatprep.subr.mxu0 0.0
      %1047 = vmatpush1.msra.mxu0 %v1020
      %1048 = vmatprep.subr.mxu0 0.0
      %1049 = vmatpush1.msra.mxu0 %v1019
      %1050 = vmatprep.subr.mxu0 0.0
      %1051 = vmatpush1.msra.mxu0 %v1018
      %1052 = vmatprep.subr.mxu0 0.0
      %1053 = vmatpush1.msra.mxu0 %v1017
      %1054 = vmatprep.subr.mxu0 0.0
      %1055 = vmatpush1.msra.mxu0 %v1016
      %1056 = vmatprep.subr.mxu0 0.0
      %1057 = vmatpush1.msra.mxu0 %v1015
      %1058 = vmatprep.subr.mxu0 0.0
      %1059 = vmatpush1.msra.mxu0 %v1014
      %1060 = vmatprep.subr.mxu0 0.0
      %1061 = vmatpush1.msra.mxu0 %v1013
      %1062 = vmatprep.subr.mxu0 0.0
      %1063 = vmatpush1.msra.mxu0 %v1012
      %1064 = vmatprep.subr.mxu0 0.0
      %1065 = vmatpush1.msra.mxu0 %v1011
      %1066 = vmatprep.subr.mxu0 0.0
      %1067 = vmatpush2.msra.mxu0 0.0
      %1068 = vmatprep.subr.mxu0 0.0
      %1069 = vmatpush2.msra.mxu0 0.0
      %1070 = vmatprep.subr.mxu0 0.0
      %1071 = vmatpush2.msra.mxu0 0.0
      %1072 = vmatprep.subr.mxu0 0.0
      %1073 = vmatpush2.msra.mxu0 0.0
      %1074 = vmatprep.subr.mxu0 0.0
      %1075 = vmatpush2.msra.mxu0 0.0
      %1076 = vmatprep.subr.mxu0 0.0
      %1077 = vmatpush2.msra.mxu0 0.0
      %1078 = vmatprep.subr.mxu0 0.0
      %1079 = vmatpush2.msra.mxu0 0.0
      %1080 = vmatprep.subr.mxu0 0.0
      %1081 = vmatpush2.msra.mxu0 0.0
      %1082 = vmatprep.subr.mxu0 0.0
      %1083 = vmatpush2.msra.mxu0 0.0
      %1084 = vmatprep.subr.mxu0 0.0
      %1085 = vmatpush2.msra.mxu0 0.0
      %1086 = vmatprep.subr.mxu0 0.0
      %1087 = vmatpush2.msra.mxu0 0.0
      %1088 = vmatprep.subr.mxu0 0.0
      %1089 = vmatpush2.msra.mxu0 0.0
      %1090 = vmatprep.subr.mxu0 0.0
      %1091 = vmatpush2.msra.mxu0 0.0
      %1092 = vmatprep.subr.mxu0 0.0
      %1093 = vmatpush2.msra.mxu0 0.0
      %1094 = vmatprep.subr.mxu0 0.0
      %1095 = vmatpush2.msra.mxu0 0.0
      %1096 = vmatprep.subr.mxu0 0.0
      %1097 = vmatpush2.msra.mxu0 0.0
      %1098 = vmatprep.mubr.f32.mxu0 0.0
      %1099 = vmatmul.mubr.f32.gmra.mxu0 %v1008
      %v1100 = vpop.f32.mrf.mxu0
      %v1101 = vadd.f32 %v1032, %v1100
      %v1102 = vpop.f32.mrf.mxu0
      %1103 = vdwg.mxu0
      %v1104 = vmax.f32 %v1101, 0.0
      %v1105 = vld [vmem:[#allocation13] sm:$0xff]
      %v1106 = vld [vmem:[#allocation13 + $0x8] sm:$0xff]
      %v1107 = vld [vmem:[#allocation13 + $0x10] sm:$0xff]
      %v1108 = vld [vmem:[#allocation13 + $0x18] sm:$0xff]
      %v1109 = vld [vmem:[#allocation13 + $0x20] sm:$0xff]
      %v1110 = vld [vmem:[#allocation13 + $0x28] sm:$0xff]
      %v1111 = vld [vmem:[#allocation13 + $0x30] sm:$0xff]
      %v1112 = vld [vmem:[#allocation13 + $0x38] sm:$0xff]
      %v1113 = vld [vmem:[#allocation13 + $0x40] sm:$0xff]
      %v1114 = vld [vmem:[#allocation13 + $0x48] sm:$0xff]
      %v1115 = vld [vmem:[#allocation13 + $0x50] sm:$0xff]
      %v1116 = vld [vmem:[#allocation13 + $0x58] sm:$0xff]
      %v1117 = vld [vmem:[#allocation13 + $0x60] sm:$0xff]
      %v1118 = vld [vmem:[#allocation13 + $0x68] sm:$0xff]
      %v1119 = vld [vmem:[#allocation13 + $0x70] sm:$0xff]
      %v1120 = vld [vmem:[#allocation13 + $0x78] sm:$0xff]
      %v1121 = vld [vmem:[%s7] sm:$0x1]
      %v1123 = vlaneseq
      %v1124 = vshrl.u32 %v1123, 7
      %v1125 = vsub.s32 0, %v1124
      %v1126 = vrot.slane %v1121, %v1125
      %1128 = vmatprep.subr.mxu0 0.0
      %1129 = vmatpush1.msra.mxu0 %v1120
      %1130 = vmatprep.subr.mxu0 0.0
      %1131 = vmatpush1.msra.mxu0 %v1119
      %1132 = vmatprep.subr.mxu0 0.0
      %1133 = vmatpush1.msra.mxu0 %v1118
      %1134 = vmatprep.subr.mxu0 0.0
      %1135 = vmatpush1.msra.mxu0 %v1117
      %1136 = vmatprep.subr.mxu0 0.0
      %1137 = vmatpush1.msra.mxu0 %v1116
      %1138 = vmatprep.subr.mxu0 0.0
      %1139 = vmatpush1.msra.mxu0 %v1115
      %1140 = vmatprep.subr.mxu0 0.0
      %1141 = vmatpush1.msra.mxu0 %v1114
      %1142 = vmatprep.subr.mxu0 0.0
      %1143 = vmatpush1.msra.mxu0 %v1113
      %1144 = vmatprep.subr.mxu0 0.0
      %1145 = vmatpush1.msra.mxu0 %v1112
      %1146 = vmatprep.subr.mxu0 0.0
      %1147 = vmatpush1.msra.mxu0 %v1111
      %1148 = vmatprep.subr.mxu0 0.0
      %1149 = vmatpush1.msra.mxu0 %v1110
      %1150 = vmatprep.subr.mxu0 0.0
      %1151 = vmatpush1.msra.mxu0 %v1109
      %1152 = vmatprep.subr.mxu0 0.0
      %1153 = vmatpush1.msra.mxu0 %v1108
      %1154 = vmatprep.subr.mxu0 0.0
      %1155 = vmatpush1.msra.mxu0 %v1107
      %1156 = vmatprep.subr.mxu0 0.0
      %1157 = vmatpush1.msra.mxu0 %v1106
      %1158 = vmatprep.subr.mxu0 0.0
      %1159 = vmatpush1.msra.mxu0 %v1105
      %1160 = vmatprep.subr.mxu0 0.0
      %1161 = vmatpush2.msra.mxu0 0.0
      %1162 = vmatprep.subr.mxu0 0.0
      %1163 = vmatpush2.msra.mxu0 0.0
      %1164 = vmatprep.subr.mxu0 0.0
      %1165 = vmatpush2.msra.mxu0 0.0
      %1166 = vmatprep.subr.mxu0 0.0
      %1167 = vmatpush2.msra.mxu0 0.0
      %1168 = vmatprep.subr.mxu0 0.0
      %1169 = vmatpush2.msra.mxu0 0.0
      %1170 = vmatprep.subr.mxu0 0.0
      %1171 = vmatpush2.msra.mxu0 0.0
      %1172 = vmatprep.subr.mxu0 0.0
      %1173 = vmatpush2.msra.mxu0 0.0
      %1174 = vmatprep.subr.mxu0 0.0
      %1175 = vmatpush2.msra.mxu0 0.0
      %1176 = vmatprep.subr.mxu0 0.0
      %1177 = vmatpush2.msra.mxu0 0.0
      %1178 = vmatprep.subr.mxu0 0.0
      %1179 = vmatpush2.msra.mxu0 0.0
      %1180 = vmatprep.subr.mxu0 0.0
      %1181 = vmatpush2.msra.mxu0 0.0
      %1182 = vmatprep.subr.mxu0 0.0
      %1183 = vmatpush2.msra.mxu0 0.0
      %1184 = vmatprep.subr.mxu0 0.0
      %1185 = vmatpush2.msra.mxu0 0.0
      %1186 = vmatprep.subr.mxu0 0.0
      %1187 = vmatpush2.msra.mxu0 0.0
      %1188 = vmatprep.subr.mxu0 0.0
      %1189 = vmatpush2.msra.mxu0 0.0
      %1190 = vmatprep.subr.mxu0 0.0
      %1191 = vmatpush2.msra.mxu0 0.0
      %1192 = vmatprep.mubr.f32.mxu0 0.0
      %1193 = vmatmul.mubr.f32.gmra.mxu0 %v1104
      %v1194 = vpop.f32.mrf.mxu0
      %v1195 = vadd.f32 %v1126, %v1194
      %v1196 = vpop.f32.mrf.mxu0
      %1197 = vdwg.mxu0
      %1198 = vst [vmem:[#allocation14] sm:$0xff] %v1195
    $region61: #{tpu_custom_call.1} parent=1 // pred_fallthru
      _
    // Predicated region
    $region62: #{tpu_custom_call.1} parent=1 // pred_check
      _
    $region63: #{tpu_custom_call.1} parent=1 // pred_check_branch
      %1200 = sbr.rel (0) target = $region65
    $region64: #{tpu_custom_call.1} parent=1 // pred_region
      %s1202 = ssub.s32 128, 128
      %1203 = vsyncadd [#allocation7], %s1202
      %s1205 = sshll.u32 [#allocation14], 4
      %s1206 = int_to_ptr.vmem [resolvable:$true] %s1205
      %1208 = dma.vmem_to_hbm [thread:$0]  %s1206, 128, %s8, [#allocation7]
    $region65: #{tpu_custom_call.1} parent=1 // pred_fallthru
      _
    // Predicated region
    $region66: #{tpu_custom_call.1} parent=1 // pred_check
      _
    $region67: #{tpu_custom_call.1} parent=1 // pred_check_branch
      %1210 = sbr.rel (0) target = $region69
    $region68: #{tpu_custom_call.1} parent=1 // pred_region
      %1211 = dma.done [#allocation7], 128
    $region69: #{tpu_custom_call.1} parent=1 // pred_fallthru
      _
    %1212 = vsyncpa [#allocation6], 1
    %1213 = vsyncpa [#allocation9], 1
    %1214 = vsyncpa [#allocation12], 1
    %1215 = vsyncpa [#allocation7], 1

</llo_original>
